<compile_context>
chip_gen: v7x
topology: tpu7x:2x2x1
jax: 0.10.0
libtpu: 0.0.40
codegen_flags: <defaults>
</compile_context>

<pallas_src>
import math

import jax
import jax.numpy as jnp
from jax.experimental import pallas as pl
from jax.experimental.pallas import tpu as pltpu

D_IN, D_H1, D_H2, D_OUT = 784, 256, 128, 1


def _leaky_relu(x, negative_slope=0.2):
    return jnp.where(x > 0, x, negative_slope * x)


def _round_up(x, m):
    return ((x + m - 1) // m) * m


def discriminator_kernel(x_ref, w1_ref, b1_ref, w2_ref, b2_ref, w3_ref, b3_ref,
                         o_ref):
    # x_ref: [TB, 784] f32 ; w1: [784, 256] bf16 ; w2: [256, 128] bf16
    # b1: [1, 256] f32 ; b2: [1, 128] f32 ; w3: [1, 128] f32 ; b3: [1] f32 SMEM
    # o_ref: [TB, 1] f32
    x = x_ref[...].astype(jnp.bfloat16)          # cast in-kernel (VPU, cheap)

    h1 = jnp.dot(x, w1_ref[...], preferred_element_type=jnp.float32)
    h1 = _leaky_relu(h1 + b1_ref[...])                      # [TB, 256] f32

    h2 = jnp.dot(h1.astype(jnp.bfloat16), w2_ref[...],
                 preferred_element_type=jnp.float32)
    h2 = _leaky_relu(h2 + b2_ref[...])                      # [TB, 128] f32

    # fc3 (out_features == 1): VPU multiply + XLU lane reduction.  Keep the
    # [TB, 1] column layout so the store needs no sublane->lane relayout.
    z = jnp.sum(h2 * w3_ref[...], axis=-1, keepdims=True) + b3_ref[0]

    # Exact sigmoid: exp on the EUP, exact divide; only TB elements.
    o_ref[...] = 1.0 / (1.0 + jnp.exp(-z))


def discriminator_forward(x, params, *, block_b=1024):
    """x: [B, 784] float32. params: dict of (w1, b1, w2, b2, w3, b3).

    Weights are stored transposed ([in, out]); w3 is stored as a (1, 128) row.
    """
    B = x.shape[0]
    b_pad = _round_up(max(B, 1), 128)
    # Batch tile: multiple of 128, capped by block_b (VMEM ~10 MiB at tb=1024,
    # inside v5e's 16 MiB scoped default; raise block_b + vmem_limit_bytes on
    # v6e/v7x), and sized so large batches get >= 4 grid steps for megacore
    # sharding and DMA/compute pipelining.  The last block may be ragged.
    tb = max(128, min(block_b, b_pad, _round_up(pl.cdiv(b_pad, 4), 128)))
    grid = (pl.cdiv(b_pad, tb),)

    w1 = params["w1"].astype(jnp.bfloat16)
    w2 = params["w2"].astype(jnp.bfloat16)
    b1, b2 = params["b1"], params["b2"]
    w3, b3 = params["w3"], params["b3"]

    flops = 2 * B * (D_IN * D_H1 + D_H1 * D_H2 + D_H2)
    bytes_accessed = (B * D_IN * 4                         # x (f32)
                      + (D_IN * D_H1 + D_H1 * D_H2) * 2    # w1, w2 (bf16)
                      + (D_H1 + D_H2 + D_H2 + 1) * 4       # b1, b2, w3, b3
                      + B * D_OUT * 4)                     # output

    out = pl.pallas_call(
        discriminator_kernel,
        out_shape=jax.ShapeDtypeStruct((B, D_OUT), jnp.float32),
        grid=grid,
        in_specs=[
            pl.BlockSpec((tb, D_IN), lambda i: (i, 0)),      # x tile (f32)
            pl.BlockSpec((D_IN, D_H1), lambda i: (0, 0)),    # w1 (VMEM-resident)
            pl.BlockSpec((1, D_H1), lambda i: (0, 0)),       # b1
            pl.BlockSpec((D_H1, D_H2), lambda i: (0, 0)),    # w2
            pl.BlockSpec((1, D_H2), lambda i: (0, 0)),       # b2
            pl.BlockSpec((1, D_H2), lambda i: (0, 0)),       # w3 row
            pl.BlockSpec(memory_space=pltpu.MemorySpace.SMEM),  # b3 scalar
        ],
        out_specs=pl.BlockSpec((tb, D_OUT), lambda i: (i, 0)),
        compiler_params=pltpu.CompilerParams(
            dimension_semantics=("parallel",)),
        cost_estimate=pl.CostEstimate(
            flops=int(flops),
            transcendentals=int(B),
            bytes_accessed=int(bytes_accessed)),
    )(x.astype(jnp.float32), w1, b1, w2, b2, w3, b3)

    return out


def init_params(key):
    """Deterministic init matching nn.Linear's default (Kaiming-uniform-ish).

    Weights stored transposed: [in_features, out_features]; w3 stored as a
    (1, 128) row so the kernel can use a VPU multiply + lane reduction.
    """
    def linear(key, fan_in, fan_out):
        k_w, k_b = jax.random.split(key)
        bound = 1.0 / math.sqrt(fan_in)
        w = jax.random.uniform(k_w, (fan_in, fan_out), jnp.float32,
                               minval=-bound, maxval=bound)
        b = jax.random.uniform(k_b, (1, fan_out), jnp.float32,
                               minval=-bound, maxval=bound)
        return w, b

    k1, k2, k3 = jax.random.split(key, 3)
    w1, b1 = linear(k1, D_IN, D_H1)
    w2, b2 = linear(k2, D_H1, D_H2)
    w3, b3 = linear(k3, D_H2, D_OUT)
    return dict(w1=w1, b1=b1, w2=w2, b2=b2,
                w3=w3.T,                 # (1, 128) row
                b3=b3.reshape(-1))       # (1,) scalar


def reference_forward(x, p):
    """Pure-JAX reference mirroring the kernel's bf16 matmul inputs."""
    xb = x.astype(jnp.bfloat16)
    w1b = p["w1"].astype(jnp.bfloat16)
    w2b = p["w2"].astype(jnp.bfloat16)
    h1 = _leaky_relu(
        jnp.dot(xb, w1b, preferred_element_type=jnp.float32) + p["b1"])
    h2 = _leaky_relu(
        jnp.dot(h1.astype(jnp.bfloat16), w2b,
                preferred_element_type=jnp.float32) + p["b2"])
    z = jnp.sum(h2 * p["w3"], axis=-1, keepdims=True) + p["b3"]
    return jax.nn.sigmoid(z)


if __name__ == "__main__":
    key = jax.random.PRNGKey(0)
    k_params, k_x1, k_x2 = jax.random.split(key, 3)

    params = init_params(k_params)

    # Small batch: single grid step, heavily ragged block.
    x_small = jax.random.normal(k_x1, (8, D_IN), jnp.float32)
    out_small = jax.block_until_ready(discriminator_forward(x_small, params))
    ref_small = reference_forward(x_small, params)
    assert out_small.shape == (8, D_OUT), out_small.shape
    assert jnp.allclose(out_small, ref_small, atol=1e-2, rtol=1e-2), (
        float(jnp.max(jnp.abs(out_small - ref_small))))

    # Larger batch: multiple grid steps + ragged last block.
    x_big = jax.random.normal(k_x2, (300, D_IN), jnp.float32)
    out_big = jax.block_until_ready(discriminator_forward(x_big, params))
    ref_big = reference_forward(x_big, params)
    assert out_big.shape == (300, D_OUT), out_big.shape
    assert jnp.allclose(out_big, ref_big, atol=1e-2, rtol=1e-2), (
        float(jnp.max(jnp.abs(out_big - ref_big))))

    print("KERNEL_OK")
</pallas_src>

<mosaic_0001>
module attributes {stable_mosaic.version = 11 : i64} {
  func.func @discriminator_kernel(%arg0: i32, %arg1: memref<128x784xf32, #tpu.memory_space<vmem>>, %arg2: memref<784x256xbf16, #tpu.memory_space<vmem>>, %arg3: memref<1x256xf32, #tpu.memory_space<vmem>>, %arg4: memref<256x128xbf16, #tpu.memory_space<vmem>>, %arg5: memref<1x128xf32, #tpu.memory_space<vmem>>, %arg6: memref<1x128xf32, #tpu.memory_space<vmem>>, %arg7: memref<1xf32, #tpu.memory_space<smem>>, %arg8: memref<128x1xf32, #tpu.memory_space<vmem>>) attributes {dimension_semantics = [#tpu.dimension_semantics<parallel>], iteration_bounds = array<i64: 1>, scalar_prefetch = 0 : i64, scratch_operands = 0 : i64, tpu.core_type = #tpu.core_type<tc>, window_params = [{transform_indices = @transform_0, window_bounds = array<i64: 128, 784>}, {pipeline_mode = #tpu.pipeline_mode<synchronous>, transform_indices = @transform_1, window_bounds = array<i64: 784, 256>}, {pipeline_mode = #tpu.pipeline_mode<synchronous>, transform_indices = @transform_2, window_bounds = array<i64: 1, 256>}, {pipeline_mode = #tpu.pipeline_mode<synchronous>, transform_indices = @transform_3, window_bounds = array<i64: 256, 128>}, {pipeline_mode = #tpu.pipeline_mode<synchronous>, transform_indices = @transform_4, window_bounds = array<i64: 1, 128>}, {pipeline_mode = #tpu.pipeline_mode<synchronous>, transform_indices = @transform_5, window_bounds = array<i64: 1, 128>}, {transform_indices = @transform_6, window_bounds = array<i64: 1>}, {transform_indices = @transform_7, window_bounds = array<i64: 128, 1>}]} {
    %c0 = arith.constant 0 : index
    %c0_0 = arith.constant 0 : index
    %0 = vector.load %arg1[%c0, %c0_0] : memref<128x784xf32, #tpu.memory_space<vmem>>, vector<128x784xf32>
    %1 = arith.truncf %0 : vector<128x784xf32> to vector<128x784xbf16>
    %c0_1 = arith.constant 0 : index
    %c0_2 = arith.constant 0 : index
    %2 = vector.load %arg2[%c0_1, %c0_2] : memref<784x256xbf16, #tpu.memory_space<vmem>>, vector<784x256xbf16>
    %cst = arith.constant dense<0.000000e+00> : vector<128x256xf32>
    %3 = tpu.matmul %1, %2, %cst {dimension_numbers = #tpu.dot_dimension_numbers<[1], [0], [0], [1], [0, 0, 1, 1], [], []>} : vector<128x784xbf16>, vector<784x256xbf16>, vector<128x256xf32> -> vector<128x256xf32>
    %c0_3 = arith.constant 0 : index
    %c0_4 = arith.constant 0 : index
    %4 = vector.load %arg3[%c0_3, %c0_4] : memref<1x256xf32, #tpu.memory_space<vmem>>, vector<1x256xf32>
    %5 = vector.broadcast %4 : vector<1x256xf32> to vector<128x256xf32>
    %6 = arith.addf %3, %5 : vector<128x256xf32>
    %cst_5 = arith.constant 0.000000e+00 : f32
    %7 = vector.broadcast %cst_5 : f32 to vector<128x256xf32>
    %8 = arith.cmpf ogt, %6, %7 : vector<128x256xf32>
    %cst_6 = arith.constant 2.000000e-01 : f32
    %9 = vector.broadcast %cst_6 : f32 to vector<128x256xf32>
    %10 = arith.mulf %9, %6 : vector<128x256xf32>
    %11 = arith.select %8, %6, %10 : vector<128x256xi1>, vector<128x256xf32>
    %12 = arith.truncf %11 : vector<128x256xf32> to vector<128x256xbf16>
    %c0_7 = arith.constant 0 : index
    %c0_8 = arith.constant 0 : index
    %13 = vector.load %arg4[%c0_7, %c0_8] : memref<256x128xbf16, #tpu.memory_space<vmem>>, vector<256x128xbf16>
    %cst_9 = arith.constant dense<0.000000e+00> : vector<128x128xf32>
    %14 = tpu.matmul %12, %13, %cst_9 {dimension_numbers = #tpu.dot_dimension_numbers<[1], [0], [0], [1], [0, 0, 1, 1], [], []>} : vector<128x256xbf16>, vector<256x128xbf16>, vector<128x128xf32> -> vector<128x128xf32>
    %c0_10 = arith.constant 0 : index
    %c0_11 = arith.constant 0 : index
    %15 = vector.load %arg5[%c0_10, %c0_11] : memref<1x128xf32, #tpu.memory_space<vmem>>, vector<1x128xf32>
    %16 = vector.broadcast %15 : vector<1x128xf32> to vector<128x128xf32>
    %17 = arith.addf %14, %16 : vector<128x128xf32>
    %cst_12 = arith.constant 0.000000e+00 : f32
    %18 = vector.broadcast %cst_12 : f32 to vector<128x128xf32>
    %19 = arith.cmpf ogt, %17, %18 : vector<128x128xf32>
    %cst_13 = arith.constant 2.000000e-01 : f32
    %20 = vector.broadcast %cst_13 : f32 to vector<128x128xf32>
    %21 = arith.mulf %20, %17 : vector<128x128xf32>
    %22 = arith.select %19, %17, %21 : vector<128x128xi1>, vector<128x128xf32>
    %c0_14 = arith.constant 0 : index
    %c0_15 = arith.constant 0 : index
    %23 = vector.load %arg6[%c0_14, %c0_15] : memref<1x128xf32, #tpu.memory_space<vmem>>, vector<1x128xf32>
    %24 = vector.broadcast %23 : vector<1x128xf32> to vector<128x128xf32>
    %25 = arith.mulf %22, %24 : vector<128x128xf32>
    %cst_16 = arith.constant dense<0.000000e+00> : vector<128xf32>
    %26 = vector.multi_reduction <add>, %25, %cst_16 [1] : vector<128x128xf32> to vector<128xf32>
    %27 = vector.shape_cast %26 : vector<128xf32> to vector<128x1xf32>
    %c0_17 = arith.constant 0 : index
    %28 = memref.load %arg7[%c0_17] : memref<1xf32, #tpu.memory_space<smem>>
    %29 = vector.broadcast %28 : f32 to vector<128x1xf32>
    %30 = arith.addf %27, %29 : vector<128x1xf32>
    %cst_18 = arith.constant 0.000000e+00 : f32
    %31 = vector.broadcast %cst_18 : f32 to vector<128x1xf32>
    %32 = arith.subf %31, %30 : vector<128x1xf32>
    %33 = math.exp %32 : vector<128x1xf32>
    %cst_19 = arith.constant 1.000000e+00 : f32
    %34 = vector.broadcast %cst_19 : f32 to vector<128x1xf32>
    %35 = arith.addf %34, %33 : vector<128x1xf32>
    %cst_20 = arith.constant 1.000000e+00 : f32
    %36 = vector.broadcast %cst_20 : f32 to vector<128x1xf32>
    %37 = arith.divf %36, %35 : vector<128x1xf32>
    %c0_21 = arith.constant 0 : index
    %c0_22 = arith.constant 0 : index
    %38 = vector.load %arg8[%c0_21, %c0_22] : memref<128x1xf32, #tpu.memory_space<vmem>>, vector<128x1xf32>
    tpu.vector_store %arg8[%c0_21, %c0_22], %37 {strides = array<i32>} : memref<128x1xf32, #tpu.memory_space<vmem>>, vector<128x1xf32>,
    return
  }
  func.func @transform_0(%arg0: i32) -> (i32, i32) {
    %c0_i32 = arith.constant 0 : i32
    %c0_i32_0 = arith.constant 0 : i32
    return %arg0, %c0_i32 : i32, i32
  }
  func.func @transform_1(%arg0: i32) -> (i32, i32) {
    %c0_i32 = arith.constant 0 : i32
    %c0_i32_0 = arith.constant 0 : i32
    %c0_i32_1 = arith.constant 0 : i32
    return %c0_i32, %c0_i32_0 : i32, i32
  }
  func.func @transform_2(%arg0: i32) -> (i32, i32) {
    %c0_i32 = arith.constant 0 : i32
    %c0_i32_0 = arith.constant 0 : i32
    %c0_i32_1 = arith.constant 0 : i32
    return %c0_i32, %c0_i32_0 : i32, i32
  }
  func.func @transform_3(%arg0: i32) -> (i32, i32) {
    %c0_i32 = arith.constant 0 : i32
    %c0_i32_0 = arith.constant 0 : i32
    %c0_i32_1 = arith.constant 0 : i32
    return %c0_i32, %c0_i32_0 : i32, i32
  }
  func.func @transform_4(%arg0: i32) -> (i32, i32) {
    %c0_i32 = arith.constant 0 : i32
    %c0_i32_0 = arith.constant 0 : i32
    %c0_i32_1 = arith.constant 0 : i32
    return %c0_i32, %c0_i32_0 : i32, i32
  }
  func.func @transform_5(%arg0: i32) -> (i32, i32) {
    %c0_i32 = arith.constant 0 : i32
    %c0_i32_0 = arith.constant 0 : i32
    %c0_i32_1 = arith.constant 0 : i32
    return %c0_i32, %c0_i32_0 : i32, i32
  }
  func.func @transform_6(%arg0: i32) -> i32 {
    %c0_i32 = arith.constant 0 : i32
    %c0_i32_0 = arith.constant 0 : i32
    return %c0_i32 : i32
  }
  func.func @transform_7(%arg0: i32) -> (i32, i32) {
    %c0_i32 = arith.constant 0 : i32
    %c0_i32_0 = arith.constant 0 : i32
    return %arg0, %c0_i32 : i32, i32
  }
}

</mosaic_0001>

<llo_original>
// kernel: tpu_custom_call.1
$region0: #{tpu_custom_call.1}
  #allocation0 [shape = 'u32[]', space=smem, size = 0x4, offset = 0x4, fixed_abs, tag = 'smem constant byte address 0x4 - core index']
  #allocation1 [shape = 'u32[144,128]{1,0:T(1,128)}', space=vmem, size = 0x12000, scoped, tag = 'internal scratch']
  #allocation2 [shape = 'f32[1]{0:T(128)S(6)}', space=smem, size = 0x200, scoped, tag = 'scoped memory for tpu_custom_call.1']
  %s0 = inlined_call_operand.hbm [shape: f32[8,784], index: 0, kind: input, shape index: {}]
  %s1 = inlined_call_operand.hbm [shape: bf16[784,256], index: 1, kind: input, shape index: {}]
  %s2 = inlined_call_operand.vmem [shape: f32[1,256], index: 2, kind: input, shape index: {}]
  %s3 = inlined_call_operand.hbm [shape: bf16[256,128], index: 3, kind: input, shape index: {}]
  %s4 = inlined_call_operand.vmem [shape: f32[1,128], index: 4, kind: input, shape index: {}]
  %s5 = inlined_call_operand.vmem [shape: f32[1,128], index: 5, kind: input, shape index: {}]
  %s6 = inlined_call_operand.<no memory space> [shape: f32[1], index: 6, kind: input, shape index: {}]
  %s7 = inlined_call_operand.vmem [shape: f32[8,1], index: 7, kind: output, shape index: {}]
  %s8 = sld [smem:[#allocation0]]
  $region84: #{tpu_custom_call.1} parent=0
    _
  %s10 = ssub.s32 1, %s8
  %s11 = scalar_select 0, %s10, %s8
  %12 = sst [smem:[#allocation2]] %s6
  $region1: #{tpu_custom_call.1} parent=0
    #allocation3 [shape = 'u8[458752]{0}', space=vmem, size = 0x70000, scoped, tag = 'input window, operand 0, single buffered']
    #allocation4 [shape = 's32[1]{0}', space=sflag, size = 0x4, scoped, tag = 'scoped memory for tpu_custom_call.1']
    #allocation5 [shape = 'u8[401408]{0}', space=vmem, size = 0x62000, scoped, tag = 'input window, operand 1, single buffered']
    #allocation6 [shape = 's32[1]{0}', space=sflag, size = 0x4, scoped, tag = 'scoped memory for tpu_custom_call.1']
    #allocation7 [shape = 'u8[65536]{0}', space=vmem, size = 0x10000, scoped, tag = 'input window, operand 3, single buffered']
    #allocation8 [shape = 'u8[65536]{0}', space=vmem, size = 0x10000, scoped, tag = 'output window, operand 0, single buffered']
    %13 = vsyncpa [#allocation4], 0
    %14 = vsyncpa [#allocation6], 0
    // Predicated region
    $region2: #{tpu_custom_call.1} parent=1 // pred_check
      _
    $region3: #{tpu_custom_call.1} parent=1 // pred_check_branch
      %16 = sbr.rel (0) target = $region5
    $region4: #{tpu_custom_call.1} parent=1 // pred_region
      %s18 = ssub.s32 14336, 896
      %19 = vsyncadd [#allocation4], %s18
      %s20 = sshll.u32 [#allocation3], 4
      %s21 = int_to_ptr.vmem [resolvable:$true] %s20
      %26 = dma.hbm_to_vmem [thread:$0]  %s0, 896, %s21, [#allocation4], 896, 896, 56
    $region5: #{tpu_custom_call.1} parent=1 // pred_fallthru
      _
    // Predicated region
    $region6: #{tpu_custom_call.1} parent=1 // pred_check
      _
    $region7: #{tpu_custom_call.1} parent=1 // pred_check_branch
      %28 = sbr.rel (0) target = $region9
    $region8: #{tpu_custom_call.1} parent=1 // pred_region
      %s30 = ssub.s32 12544, 12544
      %31 = vsyncadd [#allocation6], %s30
      %s32 = sshll.u32 [#allocation5], 4
      %s33 = int_to_ptr.vmem [resolvable:$true] %s32
      %38 = dma.hbm_to_vmem [thread:$0]  %s1, 12544, %s33, [#allocation6], 128, 128, 8
    $region9: #{tpu_custom_call.1} parent=1 // pred_fallthru
      _
    // Predicated region
    $region10: #{tpu_custom_call.1} parent=1 // pred_check
      _
    $region11: #{tpu_custom_call.1} parent=1 // pred_check_branch
      %40 = sbr.rel (0) target = $region13
    $region12: #{tpu_custom_call.1} parent=1 // pred_region
      _
    $region13: #{tpu_custom_call.1} parent=1 // pred_fallthru
      _
    // Predicated region
    $region14: #{tpu_custom_call.1} parent=1 // pred_check
      _
    $region15: #{tpu_custom_call.1} parent=1 // pred_check_branch
      %42 = sbr.rel (0) target = $region17
    $region16: #{tpu_custom_call.1} parent=1 // pred_region
      %s44 = ssub.s32 2048, 2048
      %45 = vsyncadd [#allocation6], %s44
      %s46 = sshll.u32 [#allocation7], 4
      %s47 = int_to_ptr.vmem [resolvable:$true] %s46
      %52 = dma.hbm_to_vmem [thread:$0]  %s3, 2048, %s47, [#allocation6], 64, 64, 4
    $region17: #{tpu_custom_call.1} parent=1 // pred_fallthru
      _
    // Predicated region
    $region18: #{tpu_custom_call.1} parent=1 // pred_check
      _
    $region19: #{tpu_custom_call.1} parent=1 // pred_check_branch
      %54 = sbr.rel (0) target = $region21
    $region20: #{tpu_custom_call.1} parent=1 // pred_region
      _
    $region21: #{tpu_custom_call.1} parent=1 // pred_fallthru
      _
    // Predicated region
    $region22: #{tpu_custom_call.1} parent=1 // pred_check
      _
    $region23: #{tpu_custom_call.1} parent=1 // pred_check_branch
      %56 = sbr.rel (0) target = $region25
    $region24: #{tpu_custom_call.1} parent=1 // pred_region
      _
    $region25: #{tpu_custom_call.1} parent=1 // pred_fallthru
      _
    // Predicated region
    $region26: #{tpu_custom_call.1} parent=1 // pred_check
      _
    $region27: #{tpu_custom_call.1} parent=1 // pred_check_branch
      %58 = sbr.rel (0) target = $region29
    $region28: #{tpu_custom_call.1} parent=1 // pred_region
      _
    $region29: #{tpu_custom_call.1} parent=1 // pred_fallthru
      _
    // Predicated region
    $region30: #{tpu_custom_call.1} parent=1 // pred_check
      _
    $region31: #{tpu_custom_call.1} parent=1 // pred_check_branch
      %60 = sbr.rel (0) target = $region33
    $region32: #{tpu_custom_call.1} parent=1 // pred_region
      %61 = dma.done [#allocation4], 14336
    $region33: #{tpu_custom_call.1} parent=1 // pred_fallthru
      _
    // Predicated region
    $region34: #{tpu_custom_call.1} parent=1 // pred_check
      _
    $region35: #{tpu_custom_call.1} parent=1 // pred_check_branch
      %63 = sbr.rel (0) target = $region37
    $region36: #{tpu_custom_call.1} parent=1 // pred_region
      %64 = dma.done [#allocation6], 12544
    $region37: #{tpu_custom_call.1} parent=1 // pred_fallthru
      _
    // Predicated region
    $region38: #{tpu_custom_call.1} parent=1 // pred_check
      _
    $region39: #{tpu_custom_call.1} parent=1 // pred_check_branch
      %66 = sbr.rel (0) target = $region41
    $region40: #{tpu_custom_call.1} parent=1 // pred_region
      %67 = dma.done [#allocation6], 2048
    $region41: #{tpu_custom_call.1} parent=1 // pred_fallthru
      _
    %v69 = vld [vmem:[#allocation3] sm:$0xff]
    %v70 = vld [vmem:[#allocation3 + $0x8] sm:$0xff]
    %v71 = vld [vmem:[#allocation3 + $0x10] sm:$0xff]
    %v72 = vld [vmem:[#allocation3 + $0x18] sm:$0xff]
    %v73 = vld [vmem:[#allocation3 + $0x20] sm:$0xff]
    %v74 = vld [vmem:[#allocation3 + $0x28] sm:$0xff]
    %v75 = vld [vmem:[#allocation3 + $0x30] sm:$0xff]
    %v76 = vld [vmem:[#allocation3 + $0x38] sm:$0xff]
    %v77 = vld [vmem:[#allocation3 + $0x40] sm:$0xff]
    %v78 = vld [vmem:[#allocation3 + $0x48] sm:$0xff]
    %v79 = vld [vmem:[#allocation3 + $0x50] sm:$0xff]
    %v80 = vld [vmem:[#allocation3 + $0x58] sm:$0xff]
    %v81 = vld [vmem:[#allocation3 + $0x60] sm:$0xff]
    %v82 = vld [vmem:[#allocation3 + $0x68] sm:$0xff]
    %v83 = vld [vmem:[#allocation3 + $0x70] sm:$0xff]
    %v84 = vld [vmem:[#allocation3 + $0x78] sm:$0xff]
    %v85 = vld [vmem:[#allocation3 + $0x80] sm:$0xff]
    %v86 = vld [vmem:[#allocation3 + $0x88] sm:$0xff]
    %v87 = vld [vmem:[#allocation3 + $0x90] sm:$0xff]
    %v88 = vld [vmem:[#allocation3 + $0x98] sm:$0xff]
    %v89 = vld [vmem:[#allocation3 + $0xa0] sm:$0xff]
    %v90 = vld [vmem:[#allocation3 + $0xa8] sm:$0xff]
    %v91 = vld [vmem:[#allocation3 + $0xb0] sm:$0xff]
    %v92 = vld [vmem:[#allocation3 + $0xb8] sm:$0xff]
    %v93 = vld [vmem:[#allocation3 + $0xc0] sm:$0xff]
    %v94 = vld [vmem:[#allocation3 + $0xc8] sm:$0xff]
    %v95 = vld [vmem:[#allocation3 + $0xd0] sm:$0xff]
    %v96 = vld [vmem:[#allocation3 + $0xd8] sm:$0xff]
    %v97 = vld [vmem:[#allocation3 + $0xe0] sm:$0xff]
    %v98 = vld [vmem:[#allocation3 + $0xe8] sm:$0xff]
    %v99 = vld [vmem:[#allocation3 + $0xf0] sm:$0xff]
    %v100 = vld [vmem:[#allocation3 + $0xf8] sm:$0xff]
    %v101 = vld [vmem:[#allocation3 + $0x100] sm:$0xff]
    %v102 = vld [vmem:[#allocation3 + $0x108] sm:$0xff]
    %v103 = vld [vmem:[#allocation3 + $0x110] sm:$0xff]
    %v104 = vld [vmem:[#allocation3 + $0x118] sm:$0xff]
    %v105 = vld [vmem:[#allocation3 + $0x120] sm:$0xff]
    %v106 = vld [vmem:[#allocation3 + $0x128] sm:$0xff]
    %v107 = vld [vmem:[#allocation3 + $0x130] sm:$0xff]
    %v108 = vld [vmem:[#allocation3 + $0x138] sm:$0xff]
    %v109 = vld [vmem:[#allocation3 + $0x140] sm:$0xff]
    %v110 = vld [vmem:[#allocation3 + $0x148] sm:$0xff]
    %v111 = vld [vmem:[#allocation3 + $0x150] sm:$0xff]
    %v112 = vld [vmem:[#allocation3 + $0x158] sm:$0xff]
    %v113 = vld [vmem:[#allocation3 + $0x160] sm:$0xff]
    %v114 = vld [vmem:[#allocation3 + $0x168] sm:$0xff]
    %v115 = vld [vmem:[#allocation3 + $0x170] sm:$0xff]
    %v116 = vld [vmem:[#allocation3 + $0x178] sm:$0xff]
    %v117 = vld [vmem:[#allocation3 + $0x180] sm:$0xff]
    %v118 = vld [vmem:[#allocation3 + $0x188] sm:$0xff]
    %v119 = vld [vmem:[#allocation3 + $0x190] sm:$0xff]
    %v120 = vld [vmem:[#allocation3 + $0x198] sm:$0xff]
    %v121 = vld [vmem:[#allocation3 + $0x1a0] sm:$0xff]
    %v122 = vld [vmem:[#allocation3 + $0x1a8] sm:$0xff]
    %v123 = vld [vmem:[#allocation3 + $0x1b0] sm:$0xff]
    %v124 = vld [vmem:[#allocation3 + $0x1b8] sm:$0xff]
    %v125 = vld [vmem:[#allocation3 + $0x1c0] sm:$0xff]
    %v126 = vld [vmem:[#allocation3 + $0x1c8] sm:$0xff]
    %v127 = vld [vmem:[#allocation3 + $0x1d0] sm:$0xff]
    %v128 = vld [vmem:[#allocation3 + $0x1d8] sm:$0xff]
    %v129 = vld [vmem:[#allocation3 + $0x1e0] sm:$0xff]
    %v130 = vld [vmem:[#allocation3 + $0x1e8] sm:$0xff]
    %v131 = vld [vmem:[#allocation3 + $0x1f0] sm:$0xff]
    %v132 = vld [vmem:[#allocation3 + $0x1f8] sm:$0xff]
    %v133 = vld [vmem:[#allocation3 + $0x200] sm:$0xff]
    %v134 = vld [vmem:[#allocation3 + $0x208] sm:$0xff]
    %v135 = vld [vmem:[#allocation3 + $0x210] sm:$0xff]
    %v136 = vld [vmem:[#allocation3 + $0x218] sm:$0xff]
    %v137 = vld [vmem:[#allocation3 + $0x220] sm:$0xff]
    %v138 = vld [vmem:[#allocation3 + $0x228] sm:$0xff]
    %v139 = vld [vmem:[#allocation3 + $0x230] sm:$0xff]
    %v140 = vld [vmem:[#allocation3 + $0x238] sm:$0xff]
    %v141 = vld [vmem:[#allocation3 + $0x240] sm:$0xff]
    %v142 = vld [vmem:[#allocation3 + $0x248] sm:$0xff]
    %v143 = vld [vmem:[#allocation3 + $0x250] sm:$0xff]
    %v144 = vld [vmem:[#allocation3 + $0x258] sm:$0xff]
    %v145 = vld [vmem:[#allocation3 + $0x260] sm:$0xff]
    %v146 = vld [vmem:[#allocation3 + $0x268] sm:$0xff]
    %v147 = vld [vmem:[#allocation3 + $0x270] sm:$0xff]
    %v148 = vld [vmem:[#allocation3 + $0x278] sm:$0xff]
    %v149 = vld [vmem:[#allocation3 + $0x280] sm:$0xff]
    %v150 = vld [vmem:[#allocation3 + $0x288] sm:$0xff]
    %v151 = vld [vmem:[#allocation3 + $0x290] sm:$0xff]
    %v152 = vld [vmem:[#allocation3 + $0x298] sm:$0xff]
    %v153 = vld [vmem:[#allocation3 + $0x2a0] sm:$0xff]
    %v154 = vld [vmem:[#allocation3 + $0x2a8] sm:$0xff]
    %v155 = vld [vmem:[#allocation3 + $0x2b0] sm:$0xff]
    %v156 = vld [vmem:[#allocation3 + $0x2b8] sm:$0xff]
    %v157 = vld [vmem:[#allocation3 + $0x2c0] sm:$0xff]
    %v158 = vld [vmem:[#allocation3 + $0x2c8] sm:$0xff]
    %v159 = vld [vmem:[#allocation3 + $0x2d0] sm:$0xff]
    %v160 = vld [vmem:[#allocation3 + $0x2d8] sm:$0xff]
    %v161 = vld [vmem:[#allocation3 + $0x2e0] sm:$0xff]
    %v162 = vld [vmem:[#allocation3 + $0x2e8] sm:$0xff]
    %v163 = vld [vmem:[#allocation3 + $0x2f0] sm:$0xff]
    %v164 = vld [vmem:[#allocation3 + $0x2f8] sm:$0xff]
    %v165 = vld [vmem:[#allocation3 + $0x300] sm:$0xff]
    %v166 = vld [vmem:[#allocation3 + $0x308] sm:$0xff]
    %v167 = vld [vmem:[#allocation3 + $0x310] sm:$0xff]
    %v168 = vld [vmem:[#allocation3 + $0x318] sm:$0xff]
    %v169 = vld [vmem:[#allocation3 + $0x320] sm:$0xff]
    %v170 = vld [vmem:[#allocation3 + $0x328] sm:$0xff]
    %v171 = vld [vmem:[#allocation3 + $0x330] sm:$0xff]
    %v172 = vld [vmem:[#allocation3 + $0x338] sm:$0xff]
    %v173 = vld [vmem:[#allocation3 + $0x340] sm:$0xff]
    %v174 = vld [vmem:[#allocation3 + $0x348] sm:$0xff]
    %v175 = vld [vmem:[#allocation3 + $0x350] sm:$0xff]
    %v176 = vld [vmem:[#allocation3 + $0x358] sm:$0xff]
    %v177 = vld [vmem:[#allocation3 + $0x360] sm:$0xff]
    %v178 = vld [vmem:[#allocation3 + $0x368] sm:$0xff]
    %v179 = vld [vmem:[#allocation3 + $0x370] sm:$0xff]
    %v180 = vld [vmem:[#allocation3 + $0x378] sm:$0xff]
    %v181 = vpack.c.bf16 %v76, %v69
    %v182 = vpack.c.bf16 %v77, %v70
    %v183 = vpack.c.bf16 %v78, %v71
    %v184 = vpack.c.bf16 %v79, %v72
    %v185 = vpack.c.bf16 %v80, %v73
    %v186 = vpack.c.bf16 %v81, %v74
    %v187 = vpack.c.bf16 %v82, %v75
    %v188 = vpack.c.bf16 %v90, %v83
    %v189 = vpack.c.bf16 %v91, %v84
    %v190 = vpack.c.bf16 %v92, %v85
    %v191 = vpack.c.bf16 %v93, %v86
    %v192 = vpack.c.bf16 %v94, %v87
    %v193 = vpack.c.bf16 %v95, %v88
    %v194 = vpack.c.bf16 %v96, %v89
    %v195 = vpack.c.bf16 %v104, %v97
    %v196 = vpack.c.bf16 %v105, %v98
    %v197 = vpack.c.bf16 %v106, %v99
    %v198 = vpack.c.bf16 %v107, %v100
    %v199 = vpack.c.bf16 %v108, %v101
    %v200 = vpack.c.bf16 %v109, %v102
    %v201 = vpack.c.bf16 %v110, %v103
    %v202 = vpack.c.bf16 %v118, %v111
    %v203 = vpack.c.bf16 %v119, %v112
    %v204 = vpack.c.bf16 %v120, %v113
    %v205 = vpack.c.bf16 %v121, %v114
    %v206 = vpack.c.bf16 %v122, %v115
    %v207 = vpack.c.bf16 %v123, %v116
    %v208 = vpack.c.bf16 %v124, %v117
    %v209 = vpack.c.bf16 %v132, %v125
    %v210 = vpack.c.bf16 %v133, %v126
    %v211 = vpack.c.bf16 %v134, %v127
    %v212 = vpack.c.bf16 %v135, %v128
    %v213 = vpack.c.bf16 %v136, %v129
    %v214 = vpack.c.bf16 %v137, %v130
    %v215 = vpack.c.bf16 %v138, %v131
    %v216 = vpack.c.bf16 %v146, %v139
    %v217 = vpack.c.bf16 %v147, %v140
    %v218 = vpack.c.bf16 %v148, %v141
    %v219 = vpack.c.bf16 %v149, %v142
    %v220 = vpack.c.bf16 %v150, %v143
    %v221 = vpack.c.bf16 %v151, %v144
    %v222 = vpack.c.bf16 %v152, %v145
    %v223 = vpack.c.bf16 %v160, %v153
    %v224 = vpack.c.bf16 %v161, %v154
    %v225 = vpack.c.bf16 %v162, %v155
    %v226 = vpack.c.bf16 %v163, %v156
    %v227 = vpack.c.bf16 %v164, %v157
    %v228 = vpack.c.bf16 %v165, %v158
    %v229 = vpack.c.bf16 %v166, %v159
    %v230 = vpack.c.bf16 %v174, %v167
    %v231 = vpack.c.bf16 %v175, %v168
    %v232 = vpack.c.bf16 %v176, %v169
    %v233 = vpack.c.bf16 %v177, %v170
    %v234 = vpack.c.bf16 %v178, %v171
    %v235 = vpack.c.bf16 %v179, %v172
    %v236 = vpack.c.bf16 %v180, %v173
    %v237 = vld [vmem:[#allocation5] sm:$0xff]
    %v238 = vld [vmem:[#allocation5 + $0x8] sm:$0xff]
    %v239 = vld [vmem:[#allocation5 + $0x10] sm:$0xff]
    %v240 = vld [vmem:[#allocation5 + $0x18] sm:$0xff]
    %v241 = vld [vmem:[#allocation5 + $0x20] sm:$0xff]
    %v242 = vld [vmem:[#allocation5 + $0x28] sm:$0xff]
    %v243 = vld [vmem:[#allocation5 + $0x30] sm:$0xff]
    %v244 = vld [vmem:[#allocation5 + $0x38] sm:$0xff]
    %v245 = vld [vmem:[#allocation5 + $0x40] sm:$0xff]
    %v246 = vld [vmem:[#allocation5 + $0x48] sm:$0xff]
    %v247 = vld [vmem:[#allocation5 + $0x50] sm:$0xff]
    %v248 = vld [vmem:[#allocation5 + $0x58] sm:$0xff]
    %v249 = vld [vmem:[#allocation5 + $0x60] sm:$0xff]
    %v250 = vld [vmem:[#allocation5 + $0x68] sm:$0xff]
    %v251 = vld [vmem:[#allocation5 + $0x70] sm:$0xff]
    %v252 = vld [vmem:[#allocation5 + $0x78] sm:$0xff]
    %v253 = vld [vmem:[#allocation5 + $0x80] sm:$0xff]
    %v254 = vld [vmem:[#allocation5 + $0x88] sm:$0xff]
    %v255 = vld [vmem:[#allocation5 + $0x90] sm:$0xff]
    %v256 = vld [vmem:[#allocation5 + $0x98] sm:$0xff]
    %v257 = vld [vmem:[#allocation5 + $0xa0] sm:$0xff]
    %v258 = vld [vmem:[#allocation5 + $0xa8] sm:$0xff]
    %v259 = vld [vmem:[#allocation5 + $0xb0] sm:$0xff]
    %v260 = vld [vmem:[#allocation5 + $0xb8] sm:$0xff]
    %v261 = vld [vmem:[#allocation5 + $0xc0] sm:$0xff]
    %v262 = vld [vmem:[#allocation5 + $0xc8] sm:$0xff]
    %v263 = vld [vmem:[#allocation5 + $0xd0] sm:$0xff]
    %v264 = vld [vmem:[#allocation5 + $0xd8] sm:$0xff]
    %v265 = vld [vmem:[#allocation5 + $0xe0] sm:$0xff]
    %v266 = vld [vmem:[#allocation5 + $0xe8] sm:$0xff]
    %v267 = vld [vmem:[#allocation5 + $0xf0] sm:$0xff]
    %v268 = vld [vmem:[#allocation5 + $0xf8] sm:$0xff]
    %v269 = vld [vmem:[#allocation5 + $0x100] sm:$0xff]
    %v270 = vld [vmem:[#allocation5 + $0x108] sm:$0xff]
    %v271 = vld [vmem:[#allocation5 + $0x110] sm:$0xff]
    %v272 = vld [vmem:[#allocation5 + $0x118] sm:$0xff]
    %v273 = vld [vmem:[#allocation5 + $0x120] sm:$0xff]
    %v274 = vld [vmem:[#allocation5 + $0x128] sm:$0xff]
    %v275 = vld [vmem:[#allocation5 + $0x130] sm:$0xff]
    %v276 = vld [vmem:[#allocation5 + $0x138] sm:$0xff]
    %v277 = vld [vmem:[#allocation5 + $0x140] sm:$0xff]
    %v278 = vld [vmem:[#allocation5 + $0x148] sm:$0xff]
    %v279 = vld [vmem:[#allocation5 + $0x150] sm:$0xff]
    %v280 = vld [vmem:[#allocation5 + $0x158] sm:$0xff]
    %v281 = vld [vmem:[#allocation5 + $0x160] sm:$0xff]
    %v282 = vld [vmem:[#allocation5 + $0x168] sm:$0xff]
    %v283 = vld [vmem:[#allocation5 + $0x170] sm:$0xff]
    %v284 = vld [vmem:[#allocation5 + $0x178] sm:$0xff]
    %v285 = vld [vmem:[#allocation5 + $0x180] sm:$0xff]
    %v286 = vld [vmem:[#allocation5 + $0x188] sm:$0xff]
    %v287 = vld [vmem:[#allocation5 + $0x190] sm:$0xff]
    %v288 = vld [vmem:[#allocation5 + $0x198] sm:$0xff]
    %v289 = vld [vmem:[#allocation5 + $0x1a0] sm:$0xff]
    %v290 = vld [vmem:[#allocation5 + $0x1a8] sm:$0xff]
    %v291 = vld [vmem:[#allocation5 + $0x1b0] sm:$0xff]
    %v292 = vld [vmem:[#allocation5 + $0x1b8] sm:$0xff]
    %v293 = vld [vmem:[#allocation5 + $0x1c0] sm:$0xff]
    %v294 = vld [vmem:[#allocation5 + $0x1c8] sm:$0xff]
    %v295 = vld [vmem:[#allocation5 + $0x1d0] sm:$0xff]
    %v296 = vld [vmem:[#allocation5 + $0x1d8] sm:$0xff]
    %v297 = vld [vmem:[#allocation5 + $0x1e0] sm:$0xff]
    %v298 = vld [vmem:[#allocation5 + $0x1e8] sm:$0xff]
    %v299 = vld [vmem:[#allocation5 + $0x1f0] sm:$0xff]
    %v300 = vld [vmem:[#allocation5 + $0x1f8] sm:$0xff]
    %v301 = vld [vmem:[#allocation5 + $0x200] sm:$0xff]
    %v302 = vld [vmem:[#allocation5 + $0x208] sm:$0xff]
    %v303 = vld [vmem:[#allocation5 + $0x210] sm:$0xff]
    %v304 = vld [vmem:[#allocation5 + $0x218] sm:$0xff]
    %v305 = vld [vmem:[#allocation5 + $0x220] sm:$0xff]
    %v306 = vld [vmem:[#allocation5 + $0x228] sm:$0xff]
    %v307 = vld [vmem:[#allocation5 + $0x230] sm:$0xff]
    %v308 = vld [vmem:[#allocation5 + $0x238] sm:$0xff]
    %v309 = vld [vmem:[#allocation5 + $0x240] sm:$0xff]
    %v310 = vld [vmem:[#allocation5 + $0x248] sm:$0xff]
    %v311 = vld [vmem:[#allocation5 + $0x250] sm:$0xff]
    %v312 = vld [vmem:[#allocation5 + $0x258] sm:$0xff]
    %v313 = vld [vmem:[#allocation5 + $0x260] sm:$0xff]
    %v314 = vld [vmem:[#allocation5 + $0x268] sm:$0xff]
    %v315 = vld [vmem:[#allocation5 + $0x270] sm:$0xff]
    %v316 = vld [vmem:[#allocation5 + $0x278] sm:$0xff]
    %v317 = vld [vmem:[#allocation5 + $0x280] sm:$0xff]
    %v318 = vld [vmem:[#allocation5 + $0x288] sm:$0xff]
    %v319 = vld [vmem:[#allocation5 + $0x290] sm:$0xff]
    %v320 = vld [vmem:[#allocation5 + $0x298] sm:$0xff]
    %v321 = vld [vmem:[#allocation5 + $0x2a0] sm:$0xff]
    %v322 = vld [vmem:[#allocation5 + $0x2a8] sm:$0xff]
    %v323 = vld [vmem:[#allocation5 + $0x2b0] sm:$0xff]
    %v324 = vld [vmem:[#allocation5 + $0x2b8] sm:$0xff]
    %v325 = vld [vmem:[#allocation5 + $0x2c0] sm:$0xff]
    %v326 = vld [vmem:[#allocation5 + $0x2c8] sm:$0xff]
    %v327 = vld [vmem:[#allocation5 + $0x2d0] sm:$0xff]
    %v328 = vld [vmem:[#allocation5 + $0x2d8] sm:$0xff]
    %v329 = vld [vmem:[#allocation5 + $0x2e0] sm:$0xff]
    %v330 = vld [vmem:[#allocation5 + $0x2e8] sm:$0xff]
    %v331 = vld [vmem:[#allocation5 + $0x2f0] sm:$0xff]
    %v332 = vld [vmem:[#allocation5 + $0x2f8] sm:$0xff]
    %v333 = vld [vmem:[#allocation5 + $0x300] sm:$0xff]
    %v334 = vld [vmem:[#allocation5 + $0x308] sm:$0xff]
    %v335 = vld [vmem:[%s2] sm:$0x3]
    %v337 = vlaneseq
    %v338 = vshrl.u32 %v337, 7
    %v339 = vsub.s32 0, %v338
    %v340 = vrot.slane %v335, %v339
    %v341 = vlaneseq
    %v342 = vshrl.u32 %v341, 7
    %v343 = vsub.s32 1, %v342
    %v344 = vrot.slane %v335, %v343
    %v445 = vunpack.c.l.b16 %v237
    %v446 = vunpack.c.h.b16 %v237
    %v447 = vunpack.c.l.b16 %v238
    %v448 = vunpack.c.h.b16 %v238
    %v449 = vunpack.c.l.b16 %v239
    %v450 = vunpack.c.h.b16 %v239
    %v451 = vunpack.c.l.b16 %v240
    %v452 = vunpack.c.h.b16 %v240
    %v453 = vunpack.c.l.b16 %v241
    %v454 = vunpack.c.h.b16 %v241
    %v455 = vunpack.c.l.b16 %v242
    %v456 = vunpack.c.h.b16 %v242
    %v457 = vunpack.c.l.b16 %v243
    %v458 = vunpack.c.h.b16 %v243
    %v459 = vunpack.c.l.b16 %v244
    %v460 = vunpack.c.h.b16 %v244
    %v461 = vunpack.c.l.b16 %v245
    %v462 = vunpack.c.h.b16 %v245
    %v463 = vunpack.c.l.b16 %v246
    %v464 = vunpack.c.h.b16 %v246
    %v465 = vunpack.c.l.b16 %v247
    %v466 = vunpack.c.h.b16 %v247
    %v467 = vunpack.c.l.b16 %v248
    %v468 = vunpack.c.h.b16 %v248
    %v469 = vunpack.c.l.b16 %v249
    %v470 = vunpack.c.h.b16 %v249
    %v471 = vunpack.c.l.b16 %v250
    %v472 = vunpack.c.h.b16 %v250
    %v473 = vunpack.c.l.b16 %v251
    %v474 = vunpack.c.h.b16 %v251
    %v475 = vunpack.c.l.b16 %v252
    %v476 = vunpack.c.h.b16 %v252
    %v477 = vunpack.c.l.b16 %v253
    %v478 = vunpack.c.h.b16 %v253
    %v479 = vunpack.c.l.b16 %v254
    %v480 = vunpack.c.h.b16 %v254
    %v481 = vunpack.c.l.b16 %v255
    %v482 = vunpack.c.h.b16 %v255
    %v483 = vunpack.c.l.b16 %v256
    %v484 = vunpack.c.h.b16 %v256
    %v485 = vunpack.c.l.b16 %v257
    %v486 = vunpack.c.h.b16 %v257
    %v487 = vunpack.c.l.b16 %v258
    %v488 = vunpack.c.h.b16 %v258
    %v489 = vunpack.c.l.b16 %v259
    %v490 = vunpack.c.h.b16 %v259
    %v491 = vunpack.c.l.b16 %v260
    %v492 = vunpack.c.h.b16 %v260
    %v493 = vunpack.c.l.b16 %v261
    %v494 = vunpack.c.h.b16 %v261
    %v495 = vunpack.c.l.b16 %v262
    %v496 = vunpack.c.h.b16 %v262
    %v497 = vunpack.c.l.b16 %v263
    %v498 = vunpack.c.h.b16 %v263
    %v499 = vunpack.c.l.b16 %v264
    %v500 = vunpack.c.h.b16 %v264
    %v501 = vunpack.c.l.b16 %v265
    %v502 = vunpack.c.h.b16 %v265
    %v503 = vunpack.c.l.b16 %v266
    %v504 = vunpack.c.h.b16 %v266
    %v505 = vunpack.c.l.b16 %v267
    %v506 = vunpack.c.h.b16 %v267
    %v507 = vunpack.c.l.b16 %v268
    %v508 = vunpack.c.h.b16 %v268
    %v509 = vunpack.c.l.b16 %v269
    %v510 = vunpack.c.h.b16 %v269
    %v511 = vunpack.c.l.b16 %v270
    %v512 = vunpack.c.h.b16 %v270
    %v513 = vunpack.c.l.b16 %v271
    %v514 = vunpack.c.h.b16 %v271
    %v515 = vunpack.c.l.b16 %v272
    %v516 = vunpack.c.h.b16 %v272
    %v517 = vunpack.c.l.b16 %v273
    %v518 = vunpack.c.h.b16 %v273
    %v519 = vunpack.c.l.b16 %v274
    %v520 = vunpack.c.h.b16 %v274
    %v521 = vunpack.c.l.b16 %v275
    %v522 = vunpack.c.h.b16 %v275
    %v523 = vunpack.c.l.b16 %v276
    %v524 = vunpack.c.h.b16 %v276
    %v525 = vunpack.c.l.b16 %v277
    %v526 = vunpack.c.h.b16 %v277
    %v527 = vunpack.c.l.b16 %v278
    %v528 = vunpack.c.h.b16 %v278
    %v529 = vunpack.c.l.b16 %v279
    %v530 = vunpack.c.h.b16 %v279
    %v531 = vunpack.c.l.b16 %v280
    %v532 = vunpack.c.h.b16 %v280
    %v533 = vunpack.c.l.b16 %v281
    %v534 = vunpack.c.h.b16 %v281
    %v535 = vunpack.c.l.b16 %v282
    %v536 = vunpack.c.h.b16 %v282
    %v537 = vunpack.c.l.b16 %v283
    %v538 = vunpack.c.h.b16 %v283
    %v539 = vunpack.c.l.b16 %v284
    %v540 = vunpack.c.h.b16 %v284
    %v541 = vunpack.c.l.b16 %v285
    %v542 = vunpack.c.h.b16 %v285
    %v543 = vunpack.c.l.b16 %v286
    %v544 = vunpack.c.h.b16 %v286
    %v545 = vunpack.c.l.b16 %v287
    %v546 = vunpack.c.h.b16 %v287
    %v547 = vunpack.c.l.b16 %v288
    %v548 = vunpack.c.h.b16 %v288
    %v549 = vunpack.c.l.b16 %v289
    %v550 = vunpack.c.h.b16 %v289
    %v551 = vunpack.c.l.b16 %v290
    %v552 = vunpack.c.h.b16 %v290
    %v553 = vunpack.c.l.b16 %v291
    %v554 = vunpack.c.h.b16 %v291
    %v555 = vunpack.c.l.b16 %v292
    %v556 = vunpack.c.h.b16 %v292
    %v557 = vunpack.c.l.b16 %v293
    %v558 = vunpack.c.h.b16 %v293
    %v559 = vunpack.c.l.b16 %v294
    %v560 = vunpack.c.h.b16 %v294
    %v561 = vunpack.c.l.b16 %v295
    %v562 = vunpack.c.h.b16 %v295
    %v563 = vunpack.c.l.b16 %v296
    %v564 = vunpack.c.h.b16 %v296
    %v565 = vunpack.c.l.b16 %v297
    %v566 = vunpack.c.h.b16 %v297
    %v567 = vunpack.c.l.b16 %v298
    %v568 = vunpack.c.h.b16 %v298
    %v569 = vunpack.c.l.b16 %v299
    %v570 = vunpack.c.h.b16 %v299
    %v571 = vunpack.c.l.b16 %v300
    %v572 = vunpack.c.h.b16 %v300
    %v573 = vunpack.c.l.b16 %v301
    %v574 = vunpack.c.h.b16 %v301
    %v575 = vunpack.c.l.b16 %v302
    %v576 = vunpack.c.h.b16 %v302
    %v577 = vunpack.c.l.b16 %v303
    %v578 = vunpack.c.h.b16 %v303
    %v579 = vunpack.c.l.b16 %v304
    %v580 = vunpack.c.h.b16 %v304
    %v581 = vunpack.c.l.b16 %v305
    %v582 = vunpack.c.h.b16 %v305
    %v583 = vunpack.c.l.b16 %v306
    %v584 = vunpack.c.h.b16 %v306
    %v585 = vunpack.c.l.b16 %v307
    %v586 = vunpack.c.h.b16 %v307
    %v587 = vunpack.c.l.b16 %v308
    %v588 = vunpack.c.h.b16 %v308
    %v589 = vunpack.c.l.b16 %v309
    %v590 = vunpack.c.h.b16 %v309
    %v591 = vunpack.c.l.b16 %v310
    %v592 = vunpack.c.h.b16 %v310
    %v593 = vunpack.c.l.b16 %v311
    %v594 = vunpack.c.h.b16 %v311
    %v595 = vunpack.c.l.b16 %v312
    %v596 = vunpack.c.h.b16 %v312
    %v597 = vunpack.c.l.b16 %v313
    %v598 = vunpack.c.h.b16 %v313
    %v599 = vunpack.c.l.b16 %v314
    %v600 = vunpack.c.h.b16 %v314
    %v601 = vunpack.c.l.b16 %v315
    %v602 = vunpack.c.h.b16 %v315
    %v603 = vunpack.c.l.b16 %v316
    %v604 = vunpack.c.h.b16 %v316
    %v605 = vunpack.c.l.b16 %v317
    %v606 = vunpack.c.h.b16 %v317
    %v607 = vunpack.c.l.b16 %v318
    %v608 = vunpack.c.h.b16 %v318
    %v609 = vunpack.c.l.b16 %v319
    %v610 = vunpack.c.h.b16 %v319
    %v611 = vunpack.c.l.b16 %v320
    %v612 = vunpack.c.h.b16 %v320
    %v613 = vunpack.c.l.b16 %v321
    %v614 = vunpack.c.h.b16 %v321
    %v615 = vunpack.c.l.b16 %v322
    %v616 = vunpack.c.h.b16 %v322
    %v617 = vunpack.c.l.b16 %v323
    %v618 = vunpack.c.h.b16 %v323
    %v619 = vunpack.c.l.b16 %v324
    %v620 = vunpack.c.h.b16 %v324
    %v621 = vunpack.c.l.b16 %v325
    %v622 = vunpack.c.h.b16 %v325
    %v623 = vunpack.c.l.b16 %v326
    %v624 = vunpack.c.h.b16 %v326
    %v625 = vunpack.c.l.b16 %v327
    %v626 = vunpack.c.h.b16 %v327
    %v627 = vunpack.c.l.b16 %v328
    %v628 = vunpack.c.h.b16 %v328
    %v629 = vunpack.c.l.b16 %v329
    %v630 = vunpack.c.h.b16 %v329
    %v631 = vunpack.c.l.b16 %v330
    %v632 = vunpack.c.h.b16 %v330
    %v633 = vunpack.c.l.b16 %v331
    %v634 = vunpack.c.h.b16 %v331
    %v635 = vunpack.c.l.b16 %v332
    %v636 = vunpack.c.h.b16 %v332
    %v637 = vunpack.c.l.b16 %v333
    %v638 = vunpack.c.h.b16 %v333
    %v639 = vunpack.c.l.b16 %v334
    %v640 = vunpack.c.h.b16 %v334
    %v641 = vpack.c.b16 %v447, %v445
    %v642 = vpack.c.b16 %v448, %v446
    %v643 = vpack.c.b16 %v451, %v449
    %v644 = vpack.c.b16 %v452, %v450
    %v645 = vpack.c.b16 %v455, %v453
    %v646 = vpack.c.b16 %v456, %v454
    %v647 = vpack.c.b16 %v459, %v457
    %v648 = vpack.c.b16 %v460, %v458
    %v649 = vpack.c.b16 %v463, %v461
    %v650 = vpack.c.b16 %v464, %v462
    %v651 = vpack.c.b16 %v467, %v465
    %v652 = vpack.c.b16 %v468, %v466
    %v653 = vpack.c.b16 %v471, %v469
    %v654 = vpack.c.b16 %v472, %v470
    %v655 = vpack.c.b16 %v475, %v473
    %v656 = vpack.c.b16 %v476, %v474
    %v657 = vpack.c.b16 %v479, %v477
    %v658 = vpack.c.b16 %v480, %v478
    %v659 = vpack.c.b16 %v483, %v481
    %v660 = vpack.c.b16 %v484, %v482
    %v661 = vpack.c.b16 %v487, %v485
    %v662 = vpack.c.b16 %v488, %v486
    %v663 = vpack.c.b16 %v491, %v489
    %v664 = vpack.c.b16 %v492, %v490
    %v665 = vpack.c.b16 %v495, %v493
    %v666 = vpack.c.b16 %v496, %v494
    %v667 = vpack.c.b16 %v499, %v497
    %v668 = vpack.c.b16 %v500, %v498
    %v669 = vpack.c.b16 %v503, %v501
    %v670 = vpack.c.b16 %v504, %v502
    %v671 = vpack.c.b16 %v507, %v505
    %v672 = vpack.c.b16 %v508, %v506
    %v673 = vpack.c.b16 %v511, %v509
    %v674 = vpack.c.b16 %v512, %v510
    %v675 = vpack.c.b16 %v515, %v513
    %v676 = vpack.c.b16 %v516, %v514
    %v677 = vpack.c.b16 %v519, %v517
    %v678 = vpack.c.b16 %v520, %v518
    %v679 = vpack.c.b16 %v523, %v521
    %v680 = vpack.c.b16 %v524, %v522
    %v681 = vpack.c.b16 %v527, %v525
    %v682 = vpack.c.b16 %v528, %v526
    %v683 = vpack.c.b16 %v531, %v529
    %v684 = vpack.c.b16 %v532, %v530
    %v685 = vpack.c.b16 %v535, %v533
    %v686 = vpack.c.b16 %v536, %v534
    %v687 = vpack.c.b16 %v539, %v537
    %v688 = vpack.c.b16 %v540, %v538
    %v689 = vpack.c.b16 %v543, %v541
    %v690 = vpack.c.b16 %v544, %v542
    %v691 = vpack.c.b16 %v547, %v545
    %v692 = vpack.c.b16 %v548, %v546
    %v693 = vpack.c.b16 %v551, %v549
    %v694 = vpack.c.b16 %v552, %v550
    %v695 = vpack.c.b16 %v555, %v553
    %v696 = vpack.c.b16 %v556, %v554
    %v697 = vpack.c.b16 %v559, %v557
    %v698 = vpack.c.b16 %v560, %v558
    %v699 = vpack.c.b16 %v563, %v561
    %v700 = vpack.c.b16 %v564, %v562
    %v701 = vpack.c.b16 %v567, %v565
    %v702 = vpack.c.b16 %v568, %v566
    %v703 = vpack.c.b16 %v571, %v569
    %v704 = vpack.c.b16 %v572, %v570
    %v705 = vpack.c.b16 %v575, %v573
    %v706 = vpack.c.b16 %v576, %v574
    %v707 = vpack.c.b16 %v579, %v577
    %v708 = vpack.c.b16 %v580, %v578
    %v709 = vpack.c.b16 %v583, %v581
    %v710 = vpack.c.b16 %v584, %v582
    %v711 = vpack.c.b16 %v587, %v585
    %v712 = vpack.c.b16 %v588, %v586
    %v713 = vpack.c.b16 %v591, %v589
    %v714 = vpack.c.b16 %v592, %v590
    %v715 = vpack.c.b16 %v595, %v593
    %v716 = vpack.c.b16 %v596, %v594
    %v717 = vpack.c.b16 %v599, %v597
    %v718 = vpack.c.b16 %v600, %v598
    %v719 = vpack.c.b16 %v603, %v601
    %v720 = vpack.c.b16 %v604, %v602
    %v721 = vpack.c.b16 %v607, %v605
    %v722 = vpack.c.b16 %v608, %v606
    %v723 = vpack.c.b16 %v611, %v609
    %v724 = vpack.c.b16 %v612, %v610
    %v725 = vpack.c.b16 %v615, %v613
    %v726 = vpack.c.b16 %v616, %v614
    %v727 = vpack.c.b16 %v619, %v617
    %v728 = vpack.c.b16 %v620, %v618
    %v729 = vpack.c.b16 %v623, %v621
    %v730 = vpack.c.b16 %v624, %v622
    %v731 = vpack.c.b16 %v627, %v625
    %v732 = vpack.c.b16 %v628, %v626
    %v733 = vpack.c.b16 %v631, %v629
    %v734 = vpack.c.b16 %v632, %v630
    %v735 = vpack.c.b16 %v635, %v633
    %v736 = vpack.c.b16 %v636, %v634
    %v737 = vpack.c.b16 %v639, %v637
    %v738 = vpack.c.b16 %v640, %v638
    %vm837 = vcmask 130048
    %v839 = vsel %vm837, %v187, 0
    %v842 = vsel %vm837, %v194, 0
    %v845 = vsel %vm837, %v201, 0
    %v848 = vsel %vm837, %v208, 0
    %v851 = vsel %vm837, %v215, 0
    %v854 = vsel %vm837, %v222, 0
    %v857 = vsel %vm837, %v229, 0
    %v860 = vsel %vm837, %v236, 0
    %862 = vmatprep.subr.bf16.mxu0 %v642
    %863 = vmatpush1.bf16.msra.mxu0 %v641
    %864 = vmatprep.subr.bf16.mxu0 %v644
    %865 = vmatpush1.bf16.msra.mxu0 %v643
    %866 = vmatprep.subr.bf16.mxu0 %v646
    %867 = vmatpush1.bf16.msra.mxu0 %v645
    %868 = vmatprep.subr.bf16.mxu0 %v648
    %869 = vmatpush1.bf16.msra.mxu0 %v647
    %870 = vmatprep.subr.bf16.mxu0 %v650
    %871 = vmatpush1.bf16.msra.mxu0 %v649
    %872 = vmatprep.subr.bf16.mxu0 %v652
    %873 = vmatpush1.bf16.msra.mxu0 %v651
    %874 = vmatprep.subr.bf16.mxu0 %v654
    %875 = vmatpush1.bf16.msra.mxu0 %v653
    %876 = vmatprep.subr.bf16.mxu0 %v656
    %877 = vmatpush1.bf16.msra.mxu0 %v655
    %878 = vmatprep.subr.bf16.mxu0 %v658
    %879 = vmatpush1.bf16.msra.mxu0 %v657
    %880 = vmatprep.subr.bf16.mxu0 %v660
    %881 = vmatpush1.bf16.msra.mxu0 %v659
    %882 = vmatprep.subr.bf16.mxu0 %v662
    %883 = vmatpush1.bf16.msra.mxu0 %v661
    %884 = vmatprep.subr.bf16.mxu0 %v664
    %885 = vmatpush1.bf16.msra.mxu0 %v663
    %886 = vmatprep.subr.bf16.mxu0 %v666
    %887 = vmatpush1.bf16.msra.mxu0 %v665
    %888 = vmatprep.subr.bf16.mxu0 %v668
    %889 = vmatpush1.bf16.msra.mxu0 %v667
    %890 = vmatprep.subr.bf16.mxu0 %v670
    %891 = vmatpush1.bf16.msra.mxu0 %v669
    %892 = vmatprep.subr.bf16.mxu0 %v672
    %893 = vmatpush1.bf16.msra.mxu0 %v671
    %894 = vmatprep.mubr.bf16.mxu0 %v182
    %895 = vmatmul.mubr.bf16.gmra.mrb[0].mxu0 %v181
    %v896 = vpop.f32.mrb[0].mxu0
    %v897 = vadd.f32 %v340, %v896
    %v898 = vpop.f32.mrb[0].mxu0
    %v899 = vadd.f32 %v344, %v898
    %v900 = vpop.f32.mrb[0].mxu0
    %v901 = vadd.f32 %v340, %v900
    %v902 = vpop.f32.mrb[0].mxu0
    %v903 = vadd.f32 %v344, %v902
    %904 = vmatprep.mubr.bf16.mxu0 %v189
    %905 = vmatmul.mubr.bf16.gmra.mrb[0].mxu0 %v188
    %v906 = vpop.f32.mrb[0].mxu0
    %v907 = vadd.f32 %v340, %v906
    %v908 = vpop.f32.mrb[0].mxu0
    %v909 = vadd.f32 %v344, %v908
    %v910 = vpop.f32.mrb[0].mxu0
    %v911 = vadd.f32 %v340, %v910
    %v912 = vpop.f32.mrb[0].mxu0
    %v913 = vadd.f32 %v344, %v912
    %914 = vmatprep.mubr.bf16.mxu0 %v196
    %915 = vmatmul.mubr.bf16.gmra.mrb[0].mxu0 %v195
    %v916 = vpop.f32.mrb[0].mxu0
    %v917 = vadd.f32 %v340, %v916
    %v918 = vpop.f32.mrb[0].mxu0
    %v919 = vadd.f32 %v344, %v918
    %v920 = vpop.f32.mrb[0].mxu0
    %v921 = vadd.f32 %v340, %v920
    %v922 = vpop.f32.mrb[0].mxu0
    %v923 = vadd.f32 %v344, %v922
    %924 = vmatprep.mubr.bf16.mxu0 %v203
    %925 = vmatmul.mubr.bf16.gmra.mrb[0].mxu0 %v202
    %v926 = vpop.f32.mrb[0].mxu0
    %v927 = vadd.f32 %v340, %v926
    %v928 = vpop.f32.mrb[0].mxu0
    %v929 = vadd.f32 %v344, %v928
    %v930 = vpop.f32.mrb[0].mxu0
    %v931 = vadd.f32 %v340, %v930
    %v932 = vpop.f32.mrb[0].mxu0
    %v933 = vadd.f32 %v344, %v932
    %934 = vmatprep.mubr.bf16.mxu0 %v210
    %935 = vmatmul.mubr.bf16.gmra.mrb[0].mxu0 %v209
    %v936 = vpop.f32.mrb[0].mxu0
    %v937 = vadd.f32 %v340, %v936
    %v938 = vpop.f32.mrb[0].mxu0
    %v939 = vadd.f32 %v344, %v938
    %v940 = vpop.f32.mrb[0].mxu0
    %v941 = vadd.f32 %v340, %v940
    %v942 = vpop.f32.mrb[0].mxu0
    %v943 = vadd.f32 %v344, %v942
    %944 = vmatprep.mubr.bf16.mxu0 %v217
    %945 = vmatmul.mubr.bf16.gmra.mrb[0].mxu0 %v216
    %v946 = vpop.f32.mrb[0].mxu0
    %v947 = vadd.f32 %v340, %v946
    %v948 = vpop.f32.mrb[0].mxu0
    %v949 = vadd.f32 %v344, %v948
    %v950 = vpop.f32.mrb[0].mxu0
    %v951 = vadd.f32 %v340, %v950
    %v952 = vpop.f32.mrb[0].mxu0
    %v953 = vadd.f32 %v344, %v952
    %954 = vmatprep.mubr.bf16.mxu0 %v224
    %955 = vmatmul.mubr.bf16.gmra.mrb[0].mxu0 %v223
    %v956 = vpop.f32.mrb[0].mxu0
    %v957 = vadd.f32 %v340, %v956
    %v958 = vpop.f32.mrb[0].mxu0
    %v959 = vadd.f32 %v344, %v958
    %v960 = vpop.f32.mrb[0].mxu0
    %v961 = vadd.f32 %v340, %v960
    %v962 = vpop.f32.mrb[0].mxu0
    %v963 = vadd.f32 %v344, %v962
    %964 = vmatprep.mubr.bf16.mxu0 %v231
    %965 = vmatmul.mubr.bf16.gmra.mrb[0].mxu0 %v230
    %v966 = vpop.f32.mrb[0].mxu0
    %v967 = vadd.f32 %v340, %v966
    %v968 = vpop.f32.mrb[0].mxu0
    %v969 = vadd.f32 %v344, %v968
    %v970 = vpop.f32.mrb[0].mxu0
    %v971 = vadd.f32 %v340, %v970
    %v972 = vpop.f32.mrb[0].mxu0
    %v973 = vadd.f32 %v344, %v972
    %974 = vdwg.mxu0
    %975 = vmatprep.subr.bf16.mxu0 %v674
    %976 = vmatpush1.bf16.msra.mxu0 %v673
    %977 = vmatprep.subr.bf16.mxu0 %v676
    %978 = vmatpush1.bf16.msra.mxu0 %v675
    %979 = vmatprep.subr.bf16.mxu0 %v678
    %980 = vmatpush1.bf16.msra.mxu0 %v677
    %981 = vmatprep.subr.bf16.mxu0 %v680
    %982 = vmatpush1.bf16.msra.mxu0 %v679
    %983 = vmatprep.subr.bf16.mxu0 %v682
    %984 = vmatpush1.bf16.msra.mxu0 %v681
    %985 = vmatprep.subr.bf16.mxu0 %v684
    %986 = vmatpush1.bf16.msra.mxu0 %v683
    %987 = vmatprep.subr.bf16.mxu0 %v686
    %988 = vmatpush1.bf16.msra.mxu0 %v685
    %989 = vmatprep.subr.bf16.mxu0 %v688
    %990 = vmatpush1.bf16.msra.mxu0 %v687
    %991 = vmatprep.subr.bf16.mxu0 %v690
    %992 = vmatpush1.bf16.msra.mxu0 %v689
    %993 = vmatprep.subr.bf16.mxu0 %v692
    %994 = vmatpush1.bf16.msra.mxu0 %v691
    %995 = vmatprep.subr.bf16.mxu0 %v694
    %996 = vmatpush1.bf16.msra.mxu0 %v693
    %997 = vmatprep.subr.bf16.mxu0 %v696
    %998 = vmatpush1.bf16.msra.mxu0 %v695
    %999 = vmatprep.subr.bf16.mxu0 %v698
    %1000 = vmatpush1.bf16.msra.mxu0 %v697
    %1001 = vmatprep.subr.bf16.mxu0 %v700
    %1002 = vmatpush1.bf16.msra.mxu0 %v699
    %1003 = vmatprep.subr.bf16.mxu0 %v702
    %1004 = vmatpush1.bf16.msra.mxu0 %v701
    %1005 = vmatprep.subr.bf16.mxu0 %v704
    %1006 = vmatpush1.bf16.msra.mxu0 %v703
    %1007 = vmatprep.mubr.bf16.mxu0 %v184
    %1008 = vmatmul.mubr.bf16.gmra.mrb[0].mxu0 %v183
    %v1009 = vpop.f32.mrb[0].mxu0
    %v1010 = vadd.f32 %v897, %v1009
    %v1011 = vpop.f32.mrb[0].mxu0
    %v1012 = vadd.f32 %v899, %v1011
    %v1013 = vpop.f32.mrb[0].mxu0
    %v1014 = vadd.f32 %v901, %v1013
    %v1015 = vpop.f32.mrb[0].mxu0
    %v1016 = vadd.f32 %v903, %v1015
    %1017 = vmatprep.mubr.bf16.mxu0 %v191
    %1018 = vmatmul.mubr.bf16.gmra.mrb[0].mxu0 %v190
    %v1019 = vpop.f32.mrb[0].mxu0
    %v1020 = vadd.f32 %v907, %v1019
    %v1021 = vpop.f32.mrb[0].mxu0
    %v1022 = vadd.f32 %v909, %v1021
    %v1023 = vpop.f32.mrb[0].mxu0
    %v1024 = vadd.f32 %v911, %v1023
    %v1025 = vpop.f32.mrb[0].mxu0
    %v1026 = vadd.f32 %v913, %v1025
    %1027 = vmatprep.mubr.bf16.mxu0 %v198
    %1028 = vmatmul.mubr.bf16.gmra.mrb[0].mxu0 %v197
    %v1029 = vpop.f32.mrb[0].mxu0
    %v1030 = vadd.f32 %v917, %v1029
    %v1031 = vpop.f32.mrb[0].mxu0
    %v1032 = vadd.f32 %v919, %v1031
    %v1033 = vpop.f32.mrb[0].mxu0
    %v1034 = vadd.f32 %v921, %v1033
    %v1035 = vpop.f32.mrb[0].mxu0
    %v1036 = vadd.f32 %v923, %v1035
    %1037 = vmatprep.mubr.bf16.mxu0 %v205
    %1038 = vmatmul.mubr.bf16.gmra.mrb[0].mxu0 %v204
    %v1039 = vpop.f32.mrb[0].mxu0
    %v1040 = vadd.f32 %v927, %v1039
    %v1041 = vpop.f32.mrb[0].mxu0
    %v1042 = vadd.f32 %v929, %v1041
    %v1043 = vpop.f32.mrb[0].mxu0
    %v1044 = vadd.f32 %v931, %v1043
    %v1045 = vpop.f32.mrb[0].mxu0
    %v1046 = vadd.f32 %v933, %v1045
    %1047 = vmatprep.mubr.bf16.mxu0 %v212
    %1048 = vmatmul.mubr.bf16.gmra.mrb[0].mxu0 %v211
    %v1049 = vpop.f32.mrb[0].mxu0
    %v1050 = vadd.f32 %v937, %v1049
    %v1051 = vpop.f32.mrb[0].mxu0
    %v1052 = vadd.f32 %v939, %v1051
    %v1053 = vpop.f32.mrb[0].mxu0
    %v1054 = vadd.f32 %v941, %v1053
    %v1055 = vpop.f32.mrb[0].mxu0
    %v1056 = vadd.f32 %v943, %v1055
    %1057 = vmatprep.mubr.bf16.mxu0 %v219
    %1058 = vmatmul.mubr.bf16.gmra.mrb[0].mxu0 %v218
    %v1059 = vpop.f32.mrb[0].mxu0
    %v1060 = vadd.f32 %v947, %v1059
    %v1061 = vpop.f32.mrb[0].mxu0
    %v1062 = vadd.f32 %v949, %v1061
    %v1063 = vpop.f32.mrb[0].mxu0
    %v1064 = vadd.f32 %v951, %v1063
    %v1065 = vpop.f32.mrb[0].mxu0
    %v1066 = vadd.f32 %v953, %v1065
    %1067 = vmatprep.mubr.bf16.mxu0 %v226
    %1068 = vmatmul.mubr.bf16.gmra.mrb[0].mxu0 %v225
    %v1069 = vpop.f32.mrb[0].mxu0
    %v1070 = vadd.f32 %v957, %v1069
    %v1071 = vpop.f32.mrb[0].mxu0
    %v1072 = vadd.f32 %v959, %v1071
    %v1073 = vpop.f32.mrb[0].mxu0
    %v1074 = vadd.f32 %v961, %v1073
    %v1075 = vpop.f32.mrb[0].mxu0
    %v1076 = vadd.f32 %v963, %v1075
    %1077 = vmatprep.mubr.bf16.mxu0 %v233
    %1078 = vmatmul.mubr.bf16.gmra.mrb[0].mxu0 %v232
    %v1079 = vpop.f32.mrb[0].mxu0
    %v1080 = vadd.f32 %v967, %v1079
    %v1081 = vpop.f32.mrb[0].mxu0
    %v1082 = vadd.f32 %v969, %v1081
    %v1083 = vpop.f32.mrb[0].mxu0
    %v1084 = vadd.f32 %v971, %v1083
    %v1085 = vpop.f32.mrb[0].mxu0
    %v1086 = vadd.f32 %v973, %v1085
    %1087 = vdwg.mxu0
    %1088 = vmatprep.subr.bf16.mxu0 %v706
    %1089 = vmatpush1.bf16.msra.mxu0 %v705
    %1090 = vmatprep.subr.bf16.mxu0 %v708
    %1091 = vmatpush1.bf16.msra.mxu0 %v707
    %1092 = vmatprep.subr.bf16.mxu0 %v710
    %1093 = vmatpush1.bf16.msra.mxu0 %v709
    %1094 = vmatprep.subr.bf16.mxu0 %v712
    %1095 = vmatpush1.bf16.msra.mxu0 %v711
    %1096 = vmatprep.subr.bf16.mxu0 %v714
    %1097 = vmatpush1.bf16.msra.mxu0 %v713
    %1098 = vmatprep.subr.bf16.mxu0 %v716
    %1099 = vmatpush1.bf16.msra.mxu0 %v715
    %1100 = vmatprep.subr.bf16.mxu0 %v718
    %1101 = vmatpush1.bf16.msra.mxu0 %v717
    %1102 = vmatprep.subr.bf16.mxu0 %v720
    %1103 = vmatpush1.bf16.msra.mxu0 %v719
    %1104 = vmatprep.subr.bf16.mxu0 %v722
    %1105 = vmatpush1.bf16.msra.mxu0 %v721
    %1106 = vmatprep.subr.bf16.mxu0 %v724
    %1107 = vmatpush1.bf16.msra.mxu0 %v723
    %1108 = vmatprep.subr.bf16.mxu0 %v726
    %1109 = vmatpush1.bf16.msra.mxu0 %v725
    %1110 = vmatprep.subr.bf16.mxu0 %v728
    %1111 = vmatpush1.bf16.msra.mxu0 %v727
    %1112 = vmatprep.subr.bf16.mxu0 %v730
    %1113 = vmatpush1.bf16.msra.mxu0 %v729
    %1114 = vmatprep.subr.bf16.mxu0 %v732
    %1115 = vmatpush1.bf16.msra.mxu0 %v731
    %1116 = vmatprep.subr.bf16.mxu0 %v734
    %1117 = vmatpush1.bf16.msra.mxu0 %v733
    %1118 = vmatprep.subr.bf16.mxu0 %v736
    %1119 = vmatpush1.bf16.msra.mxu0 %v735
    %1120 = vmatprep.mubr.bf16.mxu0 %v186
    %1121 = vmatmul.mubr.bf16.gmra.mrb[0].mxu0 %v185
    %v1122 = vpop.f32.mrb[0].mxu0
    %v1123 = vadd.f32 %v1010, %v1122
    %v1124 = vpop.f32.mrb[0].mxu0
    %v1125 = vadd.f32 %v1012, %v1124
    %v1126 = vpop.f32.mrb[0].mxu0
    %v1127 = vadd.f32 %v1014, %v1126
    %v1128 = vpop.f32.mrb[0].mxu0
    %v1129 = vadd.f32 %v1016, %v1128
    %1130 = vmatprep.mubr.bf16.mxu0 %v193
    %1131 = vmatmul.mubr.bf16.gmra.mrb[0].mxu0 %v192
    %v1132 = vpop.f32.mrb[0].mxu0
    %v1133 = vadd.f32 %v1020, %v1132
    %v1134 = vpop.f32.mrb[0].mxu0
    %v1135 = vadd.f32 %v1022, %v1134
    %v1136 = vpop.f32.mrb[0].mxu0
    %v1137 = vadd.f32 %v1024, %v1136
    %v1138 = vpop.f32.mrb[0].mxu0
    %v1139 = vadd.f32 %v1026, %v1138
    %1140 = vmatprep.mubr.bf16.mxu0 %v200
    %1141 = vmatmul.mubr.bf16.gmra.mrb[0].mxu0 %v199
    %v1142 = vpop.f32.mrb[0].mxu0
    %v1143 = vadd.f32 %v1030, %v1142
    %v1144 = vpop.f32.mrb[0].mxu0
    %v1145 = vadd.f32 %v1032, %v1144
    %v1146 = vpop.f32.mrb[0].mxu0
    %v1147 = vadd.f32 %v1034, %v1146
    %v1148 = vpop.f32.mrb[0].mxu0
    %v1149 = vadd.f32 %v1036, %v1148
    %1150 = vmatprep.mubr.bf16.mxu0 %v207
    %1151 = vmatmul.mubr.bf16.gmra.mrb[0].mxu0 %v206
    %v1152 = vpop.f32.mrb[0].mxu0
    %v1153 = vadd.f32 %v1040, %v1152
    %v1154 = vpop.f32.mrb[0].mxu0
    %v1155 = vadd.f32 %v1042, %v1154
    %v1156 = vpop.f32.mrb[0].mxu0
    %v1157 = vadd.f32 %v1044, %v1156
    %v1158 = vpop.f32.mrb[0].mxu0
    %v1159 = vadd.f32 %v1046, %v1158
    %1160 = vmatprep.mubr.bf16.mxu0 %v214
    %1161 = vmatmul.mubr.bf16.gmra.mrb[0].mxu0 %v213
    %v1162 = vpop.f32.mrb[0].mxu0
    %v1163 = vadd.f32 %v1050, %v1162
    %v1164 = vpop.f32.mrb[0].mxu0
    %v1165 = vadd.f32 %v1052, %v1164
    %v1166 = vpop.f32.mrb[0].mxu0
    %v1167 = vadd.f32 %v1054, %v1166
    %v1168 = vpop.f32.mrb[0].mxu0
    %v1169 = vadd.f32 %v1056, %v1168
    %1170 = vmatprep.mubr.bf16.mxu0 %v221
    %1171 = vmatmul.mubr.bf16.gmra.mrb[0].mxu0 %v220
    %v1172 = vpop.f32.mrb[0].mxu0
    %v1173 = vadd.f32 %v1060, %v1172
    %v1174 = vpop.f32.mrb[0].mxu0
    %v1175 = vadd.f32 %v1062, %v1174
    %v1176 = vpop.f32.mrb[0].mxu0
    %v1177 = vadd.f32 %v1064, %v1176
    %v1178 = vpop.f32.mrb[0].mxu0
    %v1179 = vadd.f32 %v1066, %v1178
    %1180 = vmatprep.mubr.bf16.mxu0 %v228
    %1181 = vmatmul.mubr.bf16.gmra.mrb[0].mxu0 %v227
    %v1182 = vpop.f32.mrb[0].mxu0
    %v1183 = vadd.f32 %v1070, %v1182
    %v1184 = vpop.f32.mrb[0].mxu0
    %v1185 = vadd.f32 %v1072, %v1184
    %v1186 = vpop.f32.mrb[0].mxu0
    %v1187 = vadd.f32 %v1074, %v1186
    %v1188 = vpop.f32.mrb[0].mxu0
    %v1189 = vadd.f32 %v1076, %v1188
    %1190 = vmatprep.mubr.bf16.mxu0 %v235
    %1191 = vmatmul.mubr.bf16.gmra.mrb[0].mxu0 %v234
    %v1192 = vpop.f32.mrb[0].mxu0
    %v1193 = vadd.f32 %v1080, %v1192
    %v1194 = vpop.f32.mrb[0].mxu0
    %v1195 = vadd.f32 %v1082, %v1194
    %v1196 = vpop.f32.mrb[0].mxu0
    %v1197 = vadd.f32 %v1084, %v1196
    %v1198 = vpop.f32.mrb[0].mxu0
    %v1199 = vadd.f32 %v1086, %v1198
    %1200 = vdwg.mxu0
    %1201 = vmatprep.subr.bf16.mxu0 %v738
    %1202 = vmatpush1.bf16.msra.mxu0 %v737
    %1203 = vmatprep.subr.bf16.mxu0 0
    %1204 = vmatpush1.bf16.msra.mxu0 0
    %1205 = vmatprep.subr.bf16.mxu0 0
    %1206 = vmatpush1.bf16.msra.mxu0 0
    %1207 = vmatprep.subr.bf16.mxu0 0
    %1208 = vmatpush1.bf16.msra.mxu0 0
    %1209 = vmatprep.subr.bf16.mxu0 0
    %1210 = vmatpush1.bf16.msra.mxu0 0
    %1211 = vmatprep.subr.bf16.mxu0 0
    %1212 = vmatpush1.bf16.msra.mxu0 0
    %1213 = vmatprep.subr.bf16.mxu0 0
    %1214 = vmatpush1.bf16.msra.mxu0 0
    %1215 = vmatprep.subr.bf16.mxu0 0
    %1216 = vmatpush1.bf16.msra.mxu0 0
    %1217 = vmatprep.subr.bf16.mxu0 0
    %1218 = vmatpush1.bf16.msra.mxu0 0
    %1219 = vmatprep.subr.bf16.mxu0 0
    %1220 = vmatpush1.bf16.msra.mxu0 0
    %1221 = vmatprep.subr.bf16.mxu0 0
    %1222 = vmatpush1.bf16.msra.mxu0 0
    %1223 = vmatprep.subr.bf16.mxu0 0
    %1224 = vmatpush1.bf16.msra.mxu0 0
    %1225 = vmatprep.subr.bf16.mxu0 0
    %1226 = vmatpush1.bf16.msra.mxu0 0
    %1227 = vmatprep.subr.bf16.mxu0 0
    %1228 = vmatpush1.bf16.msra.mxu0 0
    %1229 = vmatprep.subr.bf16.mxu0 0
    %1230 = vmatpush1.bf16.msra.mxu0 0
    %1231 = vmatprep.subr.bf16.mxu0 0
    %1232 = vmatpush1.bf16.msra.mxu0 0
    %1233 = vmatprep.mubr.bf16.mxu0 0
    %1234 = vmatmul.mubr.bf16.gmra.mrb[0].mxu0 %v839
    %v1235 = vpop.f32.mrb[0].mxu0
    %v1236 = vadd.f32 %v1123, %v1235
    %v1237 = vpop.f32.mrb[0].mxu0
    %v1238 = vadd.f32 %v1125, %v1237
    %v1239 = vpop.f32.mrb[0].mxu0
    %v1240 = vadd.f32 %v1127, %v1239
    %v1241 = vpop.f32.mrb[0].mxu0
    %v1242 = vadd.f32 %v1129, %v1241
    %1243 = vmatprep.mubr.bf16.mxu0 0
    %1244 = vmatmul.mubr.bf16.gmra.mrb[0].mxu0 %v842
    %v1245 = vpop.f32.mrb[0].mxu0
    %v1246 = vadd.f32 %v1133, %v1245
    %v1247 = vpop.f32.mrb[0].mxu0
    %v1248 = vadd.f32 %v1135, %v1247
    %v1249 = vpop.f32.mrb[0].mxu0
    %v1250 = vadd.f32 %v1137, %v1249
    %v1251 = vpop.f32.mrb[0].mxu0
    %v1252 = vadd.f32 %v1139, %v1251
    %1253 = vmatprep.mubr.bf16.mxu0 0
    %1254 = vmatmul.mubr.bf16.gmra.mrb[0].mxu0 %v845
    %v1255 = vpop.f32.mrb[0].mxu0
    %v1256 = vadd.f32 %v1143, %v1255
    %v1257 = vpop.f32.mrb[0].mxu0
    %v1258 = vadd.f32 %v1145, %v1257
    %v1259 = vpop.f32.mrb[0].mxu0
    %v1260 = vadd.f32 %v1147, %v1259
    %v1261 = vpop.f32.mrb[0].mxu0
    %v1262 = vadd.f32 %v1149, %v1261
    %1263 = vmatprep.mubr.bf16.mxu0 0
    %1264 = vmatmul.mubr.bf16.gmra.mrb[0].mxu0 %v848
    %v1265 = vpop.f32.mrb[0].mxu0
    %v1266 = vadd.f32 %v1153, %v1265
    %v1267 = vpop.f32.mrb[0].mxu0
    %v1268 = vadd.f32 %v1155, %v1267
    %v1269 = vpop.f32.mrb[0].mxu0
    %v1270 = vadd.f32 %v1157, %v1269
    %v1271 = vpop.f32.mrb[0].mxu0
    %v1272 = vadd.f32 %v1159, %v1271
    %1273 = vmatprep.mubr.bf16.mxu0 0
    %1274 = vmatmul.mubr.bf16.gmra.mrb[0].mxu0 %v851
    %v1275 = vpop.f32.mrb[0].mxu0
    %v1276 = vadd.f32 %v1163, %v1275
    %v1277 = vpop.f32.mrb[0].mxu0
    %v1278 = vadd.f32 %v1165, %v1277
    %v1279 = vpop.f32.mrb[0].mxu0
    %v1280 = vadd.f32 %v1167, %v1279
    %v1281 = vpop.f32.mrb[0].mxu0
    %v1282 = vadd.f32 %v1169, %v1281
    %1283 = vmatprep.mubr.bf16.mxu0 0
    %1284 = vmatmul.mubr.bf16.gmra.mrb[0].mxu0 %v854
    %v1285 = vpop.f32.mrb[0].mxu0
    %v1286 = vadd.f32 %v1173, %v1285
    %v1287 = vpop.f32.mrb[0].mxu0
    %v1288 = vadd.f32 %v1175, %v1287
    %v1289 = vpop.f32.mrb[0].mxu0
    %v1290 = vadd.f32 %v1177, %v1289
    %v1291 = vpop.f32.mrb[0].mxu0
    %v1292 = vadd.f32 %v1179, %v1291
    %1293 = vmatprep.mubr.bf16.mxu0 0
    %1294 = vmatmul.mubr.bf16.gmra.mrb[0].mxu0 %v857
    %v1295 = vpop.f32.mrb[0].mxu0
    %v1296 = vadd.f32 %v1183, %v1295
    %v1297 = vpop.f32.mrb[0].mxu0
    %v1298 = vadd.f32 %v1185, %v1297
    %v1299 = vpop.f32.mrb[0].mxu0
    %v1300 = vadd.f32 %v1187, %v1299
    %v1301 = vpop.f32.mrb[0].mxu0
    %v1302 = vadd.f32 %v1189, %v1301
    %1303 = vmatprep.mubr.bf16.mxu0 0
    %1304 = vmatmul.mubr.bf16.gmra.mrb[0].mxu0 %v860
    %v1305 = vpop.f32.mrb[0].mxu0
    %v1306 = vadd.f32 %v1193, %v1305
    %v1307 = vpop.f32.mrb[0].mxu0
    %v1308 = vadd.f32 %v1195, %v1307
    %v1309 = vpop.f32.mrb[0].mxu0
    %v1310 = vadd.f32 %v1197, %v1309
    %v1311 = vpop.f32.mrb[0].mxu0
    %v1312 = vadd.f32 %v1199, %v1311
    %1313 = vdwg.mxu0
    %vm1314 = vcmp.gt.f32.partialorder %v1236, 0.0
    %vm1315 = vcmp.gt.f32.partialorder %v1238, 0.0
    %vm1316 = vcmp.gt.f32.partialorder %v1240, 0.0
    %vm1317 = vcmp.gt.f32.partialorder %v1242, 0.0
    %vm1318 = vcmp.gt.f32.partialorder %v1246, 0.0
    %vm1319 = vcmp.gt.f32.partialorder %v1248, 0.0
    %vm1320 = vcmp.gt.f32.partialorder %v1250, 0.0
    %vm1321 = vcmp.gt.f32.partialorder %v1252, 0.0
    %vm1322 = vcmp.gt.f32.partialorder %v1256, 0.0
    %vm1323 = vcmp.gt.f32.partialorder %v1258, 0.0
    %vm1324 = vcmp.gt.f32.partialorder %v1260, 0.0
    %vm1325 = vcmp.gt.f32.partialorder %v1262, 0.0
    %vm1326 = vcmp.gt.f32.partialorder %v1266, 0.0
    %vm1327 = vcmp.gt.f32.partialorder %v1268, 0.0
    %vm1328 = vcmp.gt.f32.partialorder %v1270, 0.0
    %vm1329 = vcmp.gt.f32.partialorder %v1272, 0.0
    %vm1330 = vcmp.gt.f32.partialorder %v1276, 0.0
    %vm1331 = vcmp.gt.f32.partialorder %v1278, 0.0
    %vm1332 = vcmp.gt.f32.partialorder %v1280, 0.0
    %vm1333 = vcmp.gt.f32.partialorder %v1282, 0.0
    %vm1334 = vcmp.gt.f32.partialorder %v1286, 0.0
    %vm1335 = vcmp.gt.f32.partialorder %v1288, 0.0
    %vm1336 = vcmp.gt.f32.partialorder %v1290, 0.0
    %vm1337 = vcmp.gt.f32.partialorder %v1292, 0.0
    %vm1338 = vcmp.gt.f32.partialorder %v1296, 0.0
    %vm1339 = vcmp.gt.f32.partialorder %v1298, 0.0
    %vm1340 = vcmp.gt.f32.partialorder %v1300, 0.0
    %vm1341 = vcmp.gt.f32.partialorder %v1302, 0.0
    %vm1342 = vcmp.gt.f32.partialorder %v1306, 0.0
    %vm1343 = vcmp.gt.f32.partialorder %v1308, 0.0
    %vm1344 = vcmp.gt.f32.partialorder %v1310, 0.0
    %vm1345 = vcmp.gt.f32.partialorder %v1312, 0.0
    %v1346 = vmul.f32 %v1236, 0.2
    %v1347 = vmul.f32 %v1238, 0.2
    %v1348 = vmul.f32 %v1240, 0.2
    %v1349 = vmul.f32 %v1242, 0.2
    %v1350 = vmul.f32 %v1246, 0.2
    %v1351 = vmul.f32 %v1248, 0.2
    %v1352 = vmul.f32 %v1250, 0.2
    %v1353 = vmul.f32 %v1252, 0.2
    %v1354 = vmul.f32 %v1256, 0.2
    %v1355 = vmul.f32 %v1258, 0.2
    %v1356 = vmul.f32 %v1260, 0.2
    %v1357 = vmul.f32 %v1262, 0.2
    %v1358 = vmul.f32 %v1266, 0.2
    %v1359 = vmul.f32 %v1268, 0.2
    %v1360 = vmul.f32 %v1270, 0.2
    %v1361 = vmul.f32 %v1272, 0.2
    %v1362 = vmul.f32 %v1276, 0.2
    %v1363 = vmul.f32 %v1278, 0.2
    %v1364 = vmul.f32 %v1280, 0.2
    %v1365 = vmul.f32 %v1282, 0.2
    %v1366 = vmul.f32 %v1286, 0.2
    %v1367 = vmul.f32 %v1288, 0.2
    %v1368 = vmul.f32 %v1290, 0.2
    %v1369 = vmul.f32 %v1292, 0.2
    %v1370 = vmul.f32 %v1296, 0.2
    %v1371 = vmul.f32 %v1298, 0.2
    %v1372 = vmul.f32 %v1300, 0.2
    %v1373 = vmul.f32 %v1302, 0.2
    %v1374 = vmul.f32 %v1306, 0.2
    %v1375 = vmul.f32 %v1308, 0.2
    %v1376 = vmul.f32 %v1310, 0.2
    %v1377 = vmul.f32 %v1312, 0.2
    %v1378 = vsel %vm1314, %v1236, %v1346
    %v1379 = vsel %vm1315, %v1238, %v1347
    %v1380 = vsel %vm1316, %v1240, %v1348
    %v1381 = vsel %vm1317, %v1242, %v1349
    %v1382 = vsel %vm1318, %v1246, %v1350
    %v1383 = vsel %vm1319, %v1248, %v1351
    %v1384 = vsel %vm1320, %v1250, %v1352
    %v1385 = vsel %vm1321, %v1252, %v1353
    %v1386 = vsel %vm1322, %v1256, %v1354
    %v1387 = vsel %vm1323, %v1258, %v1355
    %v1388 = vsel %vm1324, %v1260, %v1356
    %v1389 = vsel %vm1325, %v1262, %v1357
    %v1390 = vsel %vm1326, %v1266, %v1358
    %v1391 = vsel %vm1327, %v1268, %v1359
    %v1392 = vsel %vm1328, %v1270, %v1360
    %v1393 = vsel %vm1329, %v1272, %v1361
    %v1394 = vsel %vm1330, %v1276, %v1362
    %v1395 = vsel %vm1331, %v1278, %v1363
    %v1396 = vsel %vm1332, %v1280, %v1364
    %v1397 = vsel %vm1333, %v1282, %v1365
    %v1398 = vsel %vm1334, %v1286, %v1366
    %v1399 = vsel %vm1335, %v1288, %v1367
    %v1400 = vsel %vm1336, %v1290, %v1368
    %v1401 = vsel %vm1337, %v1292, %v1369
    %v1402 = vsel %vm1338, %v1296, %v1370
    %v1403 = vsel %vm1339, %v1298, %v1371
    %v1404 = vsel %vm1340, %v1300, %v1372
    %v1405 = vsel %vm1341, %v1302, %v1373
    %v1406 = vsel %vm1342, %v1306, %v1374
    %v1407 = vsel %vm1343, %v1308, %v1375
    %v1408 = vsel %vm1344, %v1310, %v1376
    %v1409 = vsel %vm1345, %v1312, %v1377
    %v1410 = vpack.c.bf16 %v1380, %v1378
    %v1411 = vpack.c.bf16 %v1381, %v1379
    %v1412 = vpack.c.bf16 %v1384, %v1382
    %v1413 = vpack.c.bf16 %v1385, %v1383
    %v1414 = vpack.c.bf16 %v1388, %v1386
    %v1415 = vpack.c.bf16 %v1389, %v1387
    %v1416 = vpack.c.bf16 %v1392, %v1390
    %v1417 = vpack.c.bf16 %v1393, %v1391
    %v1418 = vpack.c.bf16 %v1396, %v1394
    %v1419 = vpack.c.bf16 %v1397, %v1395
    %v1420 = vpack.c.bf16 %v1400, %v1398
    %v1421 = vpack.c.bf16 %v1401, %v1399
    %v1422 = vpack.c.bf16 %v1404, %v1402
    %v1423 = vpack.c.bf16 %v1405, %v1403
    %v1424 = vpack.c.bf16 %v1408, %v1406
    %v1425 = vpack.c.bf16 %v1409, %v1407
    %v1426 = vld [vmem:[#allocation7] sm:$0xf]
    %v1427 = vld [vmem:[#allocation7 + $0x4] sm:$0xf]
    %v1428 = vld [vmem:[#allocation7 + $0x8] sm:$0xf]
    %v1429 = vld [vmem:[#allocation7 + $0xc] sm:$0xf]
    %v1430 = vld [vmem:[#allocation7 + $0x10] sm:$0xf]
    %v1431 = vld [vmem:[#allocation7 + $0x14] sm:$0xf]
    %v1432 = vld [vmem:[#allocation7 + $0x18] sm:$0xf]
    %v1433 = vld [vmem:[#allocation7 + $0x1c] sm:$0xf]
    %v1434 = vld [vmem:[#allocation7 + $0x20] sm:$0xf]
    %v1435 = vld [vmem:[#allocation7 + $0x24] sm:$0xf]
    %v1436 = vld [vmem:[#allocation7 + $0x28] sm:$0xf]
    %v1437 = vld [vmem:[#allocation7 + $0x2c] sm:$0xf]
    %v1438 = vld [vmem:[#allocation7 + $0x30] sm:$0xf]
    %v1439 = vld [vmem:[#allocation7 + $0x34] sm:$0xf]
    %v1440 = vld [vmem:[#allocation7 + $0x38] sm:$0xf]
    %v1441 = vld [vmem:[#allocation7 + $0x3c] sm:$0xf]
    %v1442 = vld [vmem:[#allocation7 + $0x40] sm:$0xf]
    %v1443 = vld [vmem:[#allocation7 + $0x44] sm:$0xf]
    %v1444 = vld [vmem:[#allocation7 + $0x48] sm:$0xf]
    %v1445 = vld [vmem:[#allocation7 + $0x4c] sm:$0xf]
    %v1446 = vld [vmem:[#allocation7 + $0x50] sm:$0xf]
    %v1447 = vld [vmem:[#allocation7 + $0x54] sm:$0xf]
    %v1448 = vld [vmem:[#allocation7 + $0x58] sm:$0xf]
    %v1449 = vld [vmem:[#allocation7 + $0x5c] sm:$0xf]
    %v1450 = vld [vmem:[#allocation7 + $0x60] sm:$0xf]
    %v1451 = vld [vmem:[#allocation7 + $0x64] sm:$0xf]
    %v1452 = vld [vmem:[#allocation7 + $0x68] sm:$0xf]
    %v1453 = vld [vmem:[#allocation7 + $0x6c] sm:$0xf]
    %v1454 = vld [vmem:[#allocation7 + $0x70] sm:$0xf]
    %v1455 = vld [vmem:[#allocation7 + $0x74] sm:$0xf]
    %v1456 = vld [vmem:[#allocation7 + $0x78] sm:$0xf]
    %v1457 = vld [vmem:[#allocation7 + $0x7c] sm:$0xf]
    %v1458 = vld [vmem:[%s4] sm:$0x1]
    %v1460 = vlaneseq
    %v1461 = vshrl.u32 %v1460, 7
    %v1462 = vsub.s32 0, %v1461
    %v1463 = vrot.slane %v1458, %v1462
    %v1497 = vunpack.c.l.b16 %v1426
    %v1498 = vunpack.c.l.b16 %v1427
    %v1499 = vunpack.c.l.b16 %v1428
    %v1500 = vunpack.c.l.b16 %v1429
    %v1501 = vunpack.c.l.b16 %v1430
    %v1502 = vunpack.c.l.b16 %v1431
    %v1503 = vunpack.c.l.b16 %v1432
    %v1504 = vunpack.c.l.b16 %v1433
    %v1505 = vunpack.c.l.b16 %v1434
    %v1506 = vunpack.c.l.b16 %v1435
    %v1507 = vunpack.c.l.b16 %v1436
    %v1508 = vunpack.c.l.b16 %v1437
    %v1509 = vunpack.c.l.b16 %v1438
    %v1510 = vunpack.c.l.b16 %v1439
    %v1511 = vunpack.c.l.b16 %v1440
    %v1512 = vunpack.c.l.b16 %v1441
    %v1513 = vunpack.c.l.b16 %v1442
    %v1514 = vunpack.c.l.b16 %v1443
    %v1515 = vunpack.c.l.b16 %v1444
    %v1516 = vunpack.c.l.b16 %v1445
    %v1517 = vunpack.c.l.b16 %v1446
    %v1518 = vunpack.c.l.b16 %v1447
    %v1519 = vunpack.c.l.b16 %v1448
    %v1520 = vunpack.c.l.b16 %v1449
    %v1521 = vunpack.c.l.b16 %v1450
    %v1522 = vunpack.c.l.b16 %v1451
    %v1523 = vunpack.c.l.b16 %v1452
    %v1524 = vunpack.c.l.b16 %v1453
    %v1525 = vunpack.c.l.b16 %v1454
    %v1526 = vunpack.c.l.b16 %v1455
    %v1527 = vunpack.c.l.b16 %v1456
    %v1528 = vunpack.c.l.b16 %v1457
    %v1529 = vpack.c.b16 %v1498, %v1497
    %v1530 = vpack.c.b16 %v1500, %v1499
    %v1531 = vpack.c.b16 %v1502, %v1501
    %v1532 = vpack.c.b16 %v1504, %v1503
    %v1533 = vpack.c.b16 %v1506, %v1505
    %v1534 = vpack.c.b16 %v1508, %v1507
    %v1535 = vpack.c.b16 %v1510, %v1509
    %v1536 = vpack.c.b16 %v1512, %v1511
    %v1537 = vpack.c.b16 %v1514, %v1513
    %v1538 = vpack.c.b16 %v1516, %v1515
    %v1539 = vpack.c.b16 %v1518, %v1517
    %v1540 = vpack.c.b16 %v1520, %v1519
    %v1541 = vpack.c.b16 %v1522, %v1521
    %v1542 = vpack.c.b16 %v1524, %v1523
    %v1543 = vpack.c.b16 %v1526, %v1525
    %v1544 = vpack.c.b16 %v1528, %v1527
    %1561 = vmatprep.subr.bf16.mxu0 0
    %1562 = vmatpush1.bf16.msra.mxu0 %v1529
    %1563 = vmatprep.subr.bf16.mxu0 0
    %1564 = vmatpush1.bf16.msra.mxu0 %v1530
    %1565 = vmatprep.subr.bf16.mxu0 0
    %1566 = vmatpush1.bf16.msra.mxu0 %v1531
    %1567 = vmatprep.subr.bf16.mxu0 0
    %1568 = vmatpush1.bf16.msra.mxu0 %v1532
    %1569 = vmatprep.subr.bf16.mxu0 0
    %1570 = vmatpush1.bf16.msra.mxu0 %v1533
    %1571 = vmatprep.subr.bf16.mxu0 0
    %1572 = vmatpush1.bf16.msra.mxu0 %v1534
    %1573 = vmatprep.subr.bf16.mxu0 0
    %1574 = vmatpush1.bf16.msra.mxu0 %v1535
    %1575 = vmatprep.subr.bf16.mxu0 0
    %1576 = vmatpush1.bf16.msra.mxu0 %v1536
    %1577 = vmatprep.subr.bf16.mxu0 0
    %1578 = vmatpush1.bf16.msra.mxu0 %v1537
    %1579 = vmatprep.subr.bf16.mxu0 0
    %1580 = vmatpush1.bf16.msra.mxu0 %v1538
    %1581 = vmatprep.subr.bf16.mxu0 0
    %1582 = vmatpush1.bf16.msra.mxu0 %v1539
    %1583 = vmatprep.subr.bf16.mxu0 0
    %1584 = vmatpush1.bf16.msra.mxu0 %v1540
    %1585 = vmatprep.subr.bf16.mxu0 0
    %1586 = vmatpush1.bf16.msra.mxu0 %v1541
    %1587 = vmatprep.subr.bf16.mxu0 0
    %1588 = vmatpush1.bf16.msra.mxu0 %v1542
    %1589 = vmatprep.subr.bf16.mxu0 0
    %1590 = vmatpush1.bf16.msra.mxu0 %v1543
    %1591 = vmatprep.subr.bf16.mxu0 0
    %1592 = vmatpush1.bf16.msra.mxu0 %v1544
    %1593 = vmatprep.mubr.bf16.mxu0 %v1411
    %1594 = vmatmul.mubr.bf16.gmra.mrb[0].mxu0 %v1410
    %v1595 = vpop.f32.mrb[0].mxu0
    %v1596 = vadd.f32 %v1463, %v1595
    %v1597 = vpop.f32.mrb[0].mxu0
    %v1598 = vpop.f32.mrb[0].mxu0
    %v1599 = vadd.f32 %v1463, %v1598
    %v1600 = vpop.f32.mrb[0].mxu0
    %1601 = vmatprep.mubr.bf16.mxu0 %v1413
    %1602 = vmatmul.mubr.bf16.gmra.mrb[0].mxu0 %v1412
    %v1603 = vpop.f32.mrb[0].mxu0
    %v1604 = vadd.f32 %v1463, %v1603
    %v1605 = vpop.f32.mrb[0].mxu0
    %v1606 = vpop.f32.mrb[0].mxu0
    %v1607 = vadd.f32 %v1463, %v1606
    %v1608 = vpop.f32.mrb[0].mxu0
    %1609 = vmatprep.mubr.bf16.mxu0 %v1415
    %1610 = vmatmul.mubr.bf16.gmra.mrb[0].mxu0 %v1414
    %v1611 = vpop.f32.mrb[0].mxu0
    %v1612 = vadd.f32 %v1463, %v1611
    %v1613 = vpop.f32.mrb[0].mxu0
    %v1614 = vpop.f32.mrb[0].mxu0
    %v1615 = vadd.f32 %v1463, %v1614
    %v1616 = vpop.f32.mrb[0].mxu0
    %1617 = vmatprep.mubr.bf16.mxu0 %v1417
    %1618 = vmatmul.mubr.bf16.gmra.mrb[0].mxu0 %v1416
    %v1619 = vpop.f32.mrb[0].mxu0
    %v1620 = vadd.f32 %v1463, %v1619
    %v1621 = vpop.f32.mrb[0].mxu0
    %v1622 = vpop.f32.mrb[0].mxu0
    %v1623 = vadd.f32 %v1463, %v1622
    %v1624 = vpop.f32.mrb[0].mxu0
    %1625 = vmatprep.mubr.bf16.mxu0 %v1419
    %1626 = vmatmul.mubr.bf16.gmra.mrb[0].mxu0 %v1418
    %v1627 = vpop.f32.mrb[0].mxu0
    %v1628 = vadd.f32 %v1463, %v1627
    %v1629 = vpop.f32.mrb[0].mxu0
    %v1630 = vpop.f32.mrb[0].mxu0
    %v1631 = vadd.f32 %v1463, %v1630
    %v1632 = vpop.f32.mrb[0].mxu0
    %1633 = vmatprep.mubr.bf16.mxu0 %v1421
    %1634 = vmatmul.mubr.bf16.gmra.mrb[0].mxu0 %v1420
    %v1635 = vpop.f32.mrb[0].mxu0
    %v1636 = vadd.f32 %v1463, %v1635
    %v1637 = vpop.f32.mrb[0].mxu0
    %v1638 = vpop.f32.mrb[0].mxu0
    %v1639 = vadd.f32 %v1463, %v1638
    %v1640 = vpop.f32.mrb[0].mxu0
    %1641 = vmatprep.mubr.bf16.mxu0 %v1423
    %1642 = vmatmul.mubr.bf16.gmra.mrb[0].mxu0 %v1422
    %v1643 = vpop.f32.mrb[0].mxu0
    %v1644 = vadd.f32 %v1463, %v1643
    %v1645 = vpop.f32.mrb[0].mxu0
    %v1646 = vpop.f32.mrb[0].mxu0
    %v1647 = vadd.f32 %v1463, %v1646
    %v1648 = vpop.f32.mrb[0].mxu0
    %1649 = vmatprep.mubr.bf16.mxu0 %v1425
    %1650 = vmatmul.mubr.bf16.gmra.mrb[0].mxu0 %v1424
    %v1651 = vpop.f32.mrb[0].mxu0
    %v1652 = vadd.f32 %v1463, %v1651
    %v1653 = vpop.f32.mrb[0].mxu0
    %v1654 = vpop.f32.mrb[0].mxu0
    %v1655 = vadd.f32 %v1463, %v1654
    %v1656 = vpop.f32.mrb[0].mxu0
    %1657 = vdwg.mxu0
    %vm1658 = vcmp.gt.f32.partialorder %v1596, 0.0
    %vm1659 = vcmp.gt.f32.partialorder %v1599, 0.0
    %vm1660 = vcmp.gt.f32.partialorder %v1604, 0.0
    %vm1661 = vcmp.gt.f32.partialorder %v1607, 0.0
    %vm1662 = vcmp.gt.f32.partialorder %v1612, 0.0
    %vm1663 = vcmp.gt.f32.partialorder %v1615, 0.0
    %vm1664 = vcmp.gt.f32.partialorder %v1620, 0.0
    %vm1665 = vcmp.gt.f32.partialorder %v1623, 0.0
    %vm1666 = vcmp.gt.f32.partialorder %v1628, 0.0
    %vm1667 = vcmp.gt.f32.partialorder %v1631, 0.0
    %vm1668 = vcmp.gt.f32.partialorder %v1636, 0.0
    %vm1669 = vcmp.gt.f32.partialorder %v1639, 0.0
    %vm1670 = vcmp.gt.f32.partialorder %v1644, 0.0
    %vm1671 = vcmp.gt.f32.partialorder %v1647, 0.0
    %vm1672 = vcmp.gt.f32.partialorder %v1652, 0.0
    %vm1673 = vcmp.gt.f32.partialorder %v1655, 0.0
    %v1674 = vmul.f32 %v1596, 0.2
    %v1675 = vmul.f32 %v1599, 0.2
    %v1676 = vmul.f32 %v1604, 0.2
    %v1677 = vmul.f32 %v1607, 0.2
    %v1678 = vmul.f32 %v1612, 0.2
    %v1679 = vmul.f32 %v1615, 0.2
    %v1680 = vmul.f32 %v1620, 0.2
    %v1681 = vmul.f32 %v1623, 0.2
    %v1682 = vmul.f32 %v1628, 0.2
    %v1683 = vmul.f32 %v1631, 0.2
    %v1684 = vmul.f32 %v1636, 0.2
    %v1685 = vmul.f32 %v1639, 0.2
    %v1686 = vmul.f32 %v1644, 0.2
    %v1687 = vmul.f32 %v1647, 0.2
    %v1688 = vmul.f32 %v1652, 0.2
    %v1689 = vmul.f32 %v1655, 0.2
    %v1690 = vsel %vm1658, %v1596, %v1674
    %v1691 = vsel %vm1659, %v1599, %v1675
    %v1692 = vsel %vm1660, %v1604, %v1676
    %v1693 = vsel %vm1661, %v1607, %v1677
    %v1694 = vsel %vm1662, %v1612, %v1678
    %v1695 = vsel %vm1663, %v1615, %v1679
    %v1696 = vsel %vm1664, %v1620, %v1680
    %v1697 = vsel %vm1665, %v1623, %v1681
    %v1698 = vsel %vm1666, %v1628, %v1682
    %v1699 = vsel %vm1667, %v1631, %v1683
    %v1700 = vsel %vm1668, %v1636, %v1684
    %v1701 = vsel %vm1669, %v1639, %v1685
    %v1702 = vsel %vm1670, %v1644, %v1686
    %v1703 = vsel %vm1671, %v1647, %v1687
    %v1704 = vsel %vm1672, %v1652, %v1688
    %v1705 = vsel %vm1673, %v1655, %v1689
    %v1706 = vld [vmem:[%s5] sm:$0x1]
    %v1708 = vlaneseq
    %v1709 = vshrl.u32 %v1708, 7
    %v1710 = vsub.s32 0, %v1709
    %v1711 = vrot.slane %v1706, %v1710
    %v1713 = vmul.f32 %v1690, %v1711
    %v1714 = vmul.f32 %v1691, %v1711
    %v1715 = vmul.f32 %v1692, %v1711
    %v1716 = vmul.f32 %v1693, %v1711
    %v1717 = vmul.f32 %v1694, %v1711
    %v1718 = vmul.f32 %v1695, %v1711
    %v1719 = vmul.f32 %v1696, %v1711
    %v1720 = vmul.f32 %v1697, %v1711
    %v1721 = vmul.f32 %v1698, %v1711
    %v1722 = vmul.f32 %v1699, %v1711
    %v1723 = vmul.f32 %v1700, %v1711
    %v1724 = vmul.f32 %v1701, %v1711
    %v1725 = vmul.f32 %v1702, %v1711
    %v1726 = vmul.f32 %v1703, %v1711
    %v1727 = vmul.f32 %v1704, %v1711
    %v1728 = vmul.f32 %v1705, %v1711
    %1729 = vadd.xlane.f32.xlu0 %v1713
    %v1730 = vpop.xlane.xlu0 %1729
    %1731 = vadd.xlane.f32.xlu0 %v1714
    %v1732 = vpop.xlane.xlu0 %1731
    %1733 = vadd.xlane.f32.xlu0 %v1715
    %v1734 = vpop.xlane.xlu0 %1733
    %1735 = vadd.xlane.f32.xlu0 %v1716
    %v1736 = vpop.xlane.xlu0 %1735
    %1737 = vadd.xlane.f32.xlu0 %v1717
    %v1738 = vpop.xlane.xlu0 %1737
    %1739 = vadd.xlane.f32.xlu0 %v1718
    %v1740 = vpop.xlane.xlu0 %1739
    %1741 = vadd.xlane.f32.xlu0 %v1719
    %v1742 = vpop.xlane.xlu0 %1741
    %1743 = vadd.xlane.f32.xlu0 %v1720
    %v1744 = vpop.xlane.xlu0 %1743
    %1745 = vadd.xlane.f32.xlu0 %v1721
    %v1746 = vpop.xlane.xlu0 %1745
    %1747 = vadd.xlane.f32.xlu0 %v1722
    %v1748 = vpop.xlane.xlu0 %1747
    %1749 = vadd.xlane.f32.xlu0 %v1723
    %v1750 = vpop.xlane.xlu0 %1749
    %1751 = vadd.xlane.f32.xlu0 %v1724
    %v1752 = vpop.xlane.xlu0 %1751
    %1753 = vadd.xlane.f32.xlu0 %v1725
    %v1754 = vpop.xlane.xlu0 %1753
    %1755 = vadd.xlane.f32.xlu0 %v1726
    %v1756 = vpop.xlane.xlu0 %1755
    %1757 = vadd.xlane.f32.xlu0 %v1727
    %v1758 = vpop.xlane.xlu0 %1757
    %1759 = vadd.xlane.f32.xlu0 %v1728
    %v1760 = vpop.xlane.xlu0 %1759
    %s1761 = sld [smem:[#allocation2]]
    %v1762 = vstv %s1761
    %v1763 = vadd.f32 %v1730, %v1762
    %v1764 = vadd.f32 %v1732, %v1762
    %v1765 = vadd.f32 %v1734, %v1762
    %v1766 = vadd.f32 %v1736, %v1762
    %v1767 = vadd.f32 %v1738, %v1762
    %v1768 = vadd.f32 %v1740, %v1762
    %v1769 = vadd.f32 %v1742, %v1762
    %v1770 = vadd.f32 %v1744, %v1762
    %v1771 = vadd.f32 %v1746, %v1762
    %v1772 = vadd.f32 %v1748, %v1762
    %v1773 = vadd.f32 %v1750, %v1762
    %v1774 = vadd.f32 %v1752, %v1762
    %v1775 = vadd.f32 %v1754, %v1762
    %v1776 = vadd.f32 %v1756, %v1762
    %v1777 = vadd.f32 %v1758, %v1762
    %v1778 = vadd.f32 %v1760, %v1762
    %v1779 = vsub.f32 0.0, %v1763
    %v1780 = vsub.f32 0.0, %v1764
    %v1781 = vsub.f32 0.0, %v1765
    %v1782 = vsub.f32 0.0, %v1766
    %v1783 = vsub.f32 0.0, %v1767
    %v1784 = vsub.f32 0.0, %v1768
    %v1785 = vsub.f32 0.0, %v1769
    %v1786 = vsub.f32 0.0, %v1770
    %v1787 = vsub.f32 0.0, %v1771
    %v1788 = vsub.f32 0.0, %v1772
    %v1789 = vsub.f32 0.0, %v1773
    %v1790 = vsub.f32 0.0, %v1774
    %v1791 = vsub.f32 0.0, %v1775
    %v1792 = vsub.f32 0.0, %v1776
    %v1793 = vsub.f32 0.0, %v1777
    %v1794 = vsub.f32 0.0, %v1778
    %v1795 = vmul.f32 %v1779, 1.442695
    %v1796 = vpow.pop %v1795
    %v1797 = vmul.f32 %v1780, 1.442695
    %v1798 = vpow.pop %v1797
    %v1799 = vmul.f32 %v1781, 1.442695
    %v1800 = vpow.pop %v1799
    %v1801 = vmul.f32 %v1782, 1.442695
    %v1802 = vpow.pop %v1801
    %v1803 = vmul.f32 %v1783, 1.442695
    %v1804 = vpow.pop %v1803
    %v1805 = vmul.f32 %v1784, 1.442695
    %v1806 = vpow.pop %v1805
    %v1807 = vmul.f32 %v1785, 1.442695
    %v1808 = vpow.pop %v1807
    %v1809 = vmul.f32 %v1786, 1.442695
    %v1810 = vpow.pop %v1809
    %v1811 = vmul.f32 %v1787, 1.442695
    %v1812 = vpow.pop %v1811
    %v1813 = vmul.f32 %v1788, 1.442695
    %v1814 = vpow.pop %v1813
    %v1815 = vmul.f32 %v1789, 1.442695
    %v1816 = vpow.pop %v1815
    %v1817 = vmul.f32 %v1790, 1.442695
    %v1818 = vpow.pop %v1817
    %v1819 = vmul.f32 %v1791, 1.442695
    %v1820 = vpow.pop %v1819
    %v1821 = vmul.f32 %v1792, 1.442695
    %v1822 = vpow.pop %v1821
    %v1823 = vmul.f32 %v1793, 1.442695
    %v1824 = vpow.pop %v1823
    %v1825 = vmul.f32 %v1794, 1.442695
    %v1826 = vpow.pop %v1825
    %v1827 = vadd.f32 %v1796, 1.0
    %v1828 = vadd.f32 %v1798, 1.0
    %v1829 = vadd.f32 %v1800, 1.0
    %v1830 = vadd.f32 %v1802, 1.0
    %v1831 = vadd.f32 %v1804, 1.0
    %v1832 = vadd.f32 %v1806, 1.0
    %v1833 = vadd.f32 %v1808, 1.0
    %v1834 = vadd.f32 %v1810, 1.0
    %v1835 = vadd.f32 %v1812, 1.0
    %v1836 = vadd.f32 %v1814, 1.0
    %v1837 = vadd.f32 %v1816, 1.0
    %v1838 = vadd.f32 %v1818, 1.0
    %v1839 = vadd.f32 %v1820, 1.0
    %v1840 = vadd.f32 %v1822, 1.0
    %v1841 = vadd.f32 %v1824, 1.0
    %v1842 = vadd.f32 %v1826, 1.0
    %v1843 = vrcp.pop %v1827
    %v1844 = vmul.f32 1.0, %v1843
    %v1845 = vrcp.pop %v1828
    %v1846 = vmul.f32 1.0, %v1845
    %v1847 = vrcp.pop %v1829
    %v1848 = vmul.f32 1.0, %v1847
    %v1849 = vrcp.pop %v1830
    %v1850 = vmul.f32 1.0, %v1849
    %v1851 = vrcp.pop %v1831
    %v1852 = vmul.f32 1.0, %v1851
    %v1853 = vrcp.pop %v1832
    %v1854 = vmul.f32 1.0, %v1853
    %v1855 = vrcp.pop %v1833
    %v1856 = vmul.f32 1.0, %v1855
    %v1857 = vrcp.pop %v1834
    %v1858 = vmul.f32 1.0, %v1857
    %v1859 = vrcp.pop %v1835
    %v1860 = vmul.f32 1.0, %v1859
    %v1861 = vrcp.pop %v1836
    %v1862 = vmul.f32 1.0, %v1861
    %v1863 = vrcp.pop %v1837
    %v1864 = vmul.f32 1.0, %v1863
    %v1865 = vrcp.pop %v1838
    %v1866 = vmul.f32 1.0, %v1865
    %v1867 = vrcp.pop %v1839
    %v1868 = vmul.f32 1.0, %v1867
    %v1869 = vrcp.pop %v1840
    %v1870 = vmul.f32 1.0, %v1869
    %v1871 = vrcp.pop %v1841
    %v1872 = vmul.f32 1.0, %v1871
    %v1873 = vrcp.pop %v1842
    %v1874 = vmul.f32 1.0, %v1873
    %vm1875 = vcmask 7168
    %1876 = vst.msk [vmem:[#allocation8] sm:$0xff] %vm1875, %v1844
    %1877 = vst.msk [vmem:[#allocation8 + $0x8] sm:$0xff] %vm1875, %v1846
    %1878 = vst.msk [vmem:[#allocation8 + $0x10] sm:$0xff] %vm1875, %v1848
    %1879 = vst.msk [vmem:[#allocation8 + $0x18] sm:$0xff] %vm1875, %v1850
    %1880 = vst.msk [vmem:[#allocation8 + $0x20] sm:$0xff] %vm1875, %v1852
    %1881 = vst.msk [vmem:[#allocation8 + $0x28] sm:$0xff] %vm1875, %v1854
    %1882 = vst.msk [vmem:[#allocation8 + $0x30] sm:$0xff] %vm1875, %v1856
    %1883 = vst.msk [vmem:[#allocation8 + $0x38] sm:$0xff] %vm1875, %v1858
    %1884 = vst.msk [vmem:[#allocation8 + $0x40] sm:$0xff] %vm1875, %v1860
    %1885 = vst.msk [vmem:[#allocation8 + $0x48] sm:$0xff] %vm1875, %v1862
    %1886 = vst.msk [vmem:[#allocation8 + $0x50] sm:$0xff] %vm1875, %v1864
    %1887 = vst.msk [vmem:[#allocation8 + $0x58] sm:$0xff] %vm1875, %v1866
    %1888 = vst.msk [vmem:[#allocation8 + $0x60] sm:$0xff] %vm1875, %v1868
    %1889 = vst.msk [vmem:[#allocation8 + $0x68] sm:$0xff] %vm1875, %v1870
    %1890 = vst.msk [vmem:[#allocation8 + $0x70] sm:$0xff] %vm1875, %v1872
    %1891 = vst.msk [vmem:[#allocation8 + $0x78] sm:$0xff] %vm1875, %v1874
    // Predicated region
    $region42: #{tpu_custom_call.1} parent=1 // pred_check
      _
    $region43: #{tpu_custom_call.1} parent=1 // pred_check_branch
      %1893 = sbr.rel (0) target = $region45
    $region44: #{tpu_custom_call.1} parent=1 // pred_region
      // Predicated region
      $region46: #{tpu_custom_call.1} parent=44 // pred_check
        _
      $region47: #{tpu_custom_call.1} parent=44 // pred_check_branch
        %1895 = sbr.rel (0) target = $region49
      $region48: #{tpu_custom_call.1} parent=44 // pred_region
        // Predicated region
        $region50: #{tpu_custom_call.1} parent=48 // pred_check
          _
        $region51: #{tpu_custom_call.1} parent=48 // pred_check_branch
          %1897 = sbr.rel (0) target = $region53
        $region52: #{tpu_custom_call.1} parent=48 // pred_region
          // Predicated region
          $region65: #{tpu_custom_call.1} parent=52 // pred_check
            _
          $region66: #{tpu_custom_call.1} parent=52 // pred_check_branch
            %1912 = sbr.rel (0) target = $region68
          $region67: #{tpu_custom_call.1} parent=52 // pred_region
            loop: start=0, step=1, limit=1
            $region69: #{tpu_custom_call.1} parent=67 // loop_pre_header
              _
            $region70: #{tpu_custom_call.1} parent=67 // loop_header
              %s1914 = sphi 0, %s1918
              %p1915 = scmp.ge.s32.totalorder %s1914, 1
              %s1919 = sphi [#allocation8], [#allocation8]
              %s1920 = sphi %s7, %s7
            $region71: #{tpu_custom_call.1} parent=67 // loop_header_branch
              %1917 = sbr.rel (%p1915) target = $region75
            $region72: #{tpu_custom_call.1} parent=67 // loop_body
              %v1921 = vld [vmem:[%s1919] sm:$0xff]
              %1922 = vst [vmem:[%s1920] sm:$0xff] %v1921
            $region73: #{tpu_custom_call.1} parent=67 // loop_footer
              %s1918 = sadd.s32 1, %s1914
            $region74: #{tpu_custom_call.1} parent=67 // loop_footer_branch
              %1913 = sbr.rel target = $region70
            $region75: #{tpu_custom_call.1} parent=67 // loop_exit
              _
          $region68: #{tpu_custom_call.1} parent=52 // pred_fallthru
            _
          // Predicated region
          $region76: #{tpu_custom_call.1} parent=52 // pred_check
            _
          $region77: #{tpu_custom_call.1} parent=52 // pred_check_branch
            %1924 = sbr.rel target = $region79
          $region78: #{tpu_custom_call.1} parent=52 // pred_region
            _
          $region79: #{tpu_custom_call.1} parent=52 // pred_fallthru
            _
        $region53: #{tpu_custom_call.1} parent=48 // pred_fallthru
          _
        // Predicated region
        $region54: #{tpu_custom_call.1} parent=48 // pred_check
          _
        $region55: #{tpu_custom_call.1} parent=48 // pred_check_branch
          %1899 = sbr.rel target = $region57
        $region56: #{tpu_custom_call.1} parent=48 // pred_region
          loop: start=0, step=1, limit=1
          $region58: #{tpu_custom_call.1} parent=56 // loop_pre_header
            _
          $region59: #{tpu_custom_call.1} parent=56 // loop_header
            %s1902 = sphi 0, %s1906
            %p1903 = scmp.ge.s32.totalorder %s1902, 1
            %s1907 = sphi [#allocation8], [#allocation8]
            %s1908 = sphi %s7, %s7
          $region60: #{tpu_custom_call.1} parent=56 // loop_header_branch
            %1905 = sbr.rel (%p1903) target = $region64
          $region61: #{tpu_custom_call.1} parent=56 // loop_body
            %v1909 = vld [vmem:[%s1907] sm:$0xff]
            %1910 = vst [vmem:[%s1908] sm:$0xff] %v1909
          $region62: #{tpu_custom_call.1} parent=56 // loop_footer
            %s1906 = sadd.s32 1, %s1902
          $region63: #{tpu_custom_call.1} parent=56 // loop_footer_branch
            %1901 = sbr.rel target = $region59
          $region64: #{tpu_custom_call.1} parent=56 // loop_exit
            _
        $region57: #{tpu_custom_call.1} parent=48 // pred_fallthru
          _
      $region49: #{tpu_custom_call.1} parent=44 // pred_fallthru
        _
      %1925 = vnop
    $region45: #{tpu_custom_call.1} parent=1 // pred_fallthru
      _
    // Predicated region
    $region80: #{tpu_custom_call.1} parent=1 // pred_check
      _
    $region81: #{tpu_custom_call.1} parent=1 // pred_check_branch
      %1927 = sbr.rel (0) target = $region83
    $region82: #{tpu_custom_call.1} parent=1 // pred_region
      _
    $region83: #{tpu_custom_call.1} parent=1 // pred_fallthru
      _
    %1928 = vsyncpa [#allocation4], 1
    %1929 = vsyncpa [#allocation6], 1

</llo_original>
